<compile_context>
chip_gen: v5e
topology: v5e:2x2
jax: 0.10.0
libtpu: 0.0.40
codegen_flags: <defaults>
</compile_context>

<pallas_src>
from dataclasses import dataclass
from typing import Tuple

import numpy as np
import jax
import jax.numpy as jnp
from jax.experimental import pallas as pl
from jax.experimental.pallas import tpu as pltpu


@dataclass(frozen=True)
class HeadMeta:
    n_fields: int
    n_confidences: int
    n_vectors: int
    n_scales: int
    vector_offsets: Tuple[bool, ...]
    upsample_stride: int = 1


def _round_up(v, m):
    return ((v + m - 1) // m) * m


def _cdiv(a, b):
    return -(-a // b)


def _pick_tile_s(S, B, cap_cols):
    """Spatial tile: multiple of 128 lanes, <= cap, small masked waste.

    With B == 1 the cap is halved so v7x's two TensorCores both get spatial tiles.
    """
    cap = max(128, min(cap_cols, _round_up(S, 128)))
    if B == 1 and S > 128:
        cap = min(cap, max(128, _round_up(_cdiv(S, 2), 128)))
    cap = max(128, (cap // 128) * 128)
    cands = list(range(128, cap + 1, 128))

    def wasted(t):  # columns of the last (masked) tile that are never stored
        return _cdiv(S, t) * t - S

    good = [t for t in cands if wasted(t) < 128]
    if good:
        return max(good)
    return min(cands, key=lambda t: (wasted(t), -t))


def composite_field3_forward(x, conv_weight, conv_bias, meta, *,
                             max_tile=2048,
                             mxu_bf16=True,
                             vmem_budget_bytes=40 * 2**20):
    """Inference forward of CompositeField3 (eval mode, inplace_ops semantics).

    x:           [B, C_in, H, W]            activations (streamed in native dtype)
    conv_weight: [C_out, C_in] (or 4D 1x1)  1x1 conv kernel, C_out = n_fields*n_comp
    conv_bias:   [C_out]
    Returns:     [B, n_fields, 1 + n_conf + 2*n_vec + n_scales, H, W]  (float32)
    """
    assert meta.upsample_stride == 1  # TODO(synk): PixelShuffle upsample path not implemented.
    x = jnp.asarray(x)
    B, C_in, H, W = x.shape
    nf, nc, nv, ns = meta.n_fields, meta.n_confidences, meta.n_vectors, meta.n_scales
    n_comp = nc + 3 * nv + ns
    n_out = 1 + nc + 2 * nv + ns

    conv_weight = jnp.asarray(conv_weight)
    if conv_weight.ndim == 4:
        assert conv_weight.shape[2:] == (1, 1)  # TODO(synk): only the 1x1 head conv is supported.
        conv_weight = conv_weight.reshape(conv_weight.shape[0], conv_weight.shape[1])
    conv_bias = jnp.asarray(conv_bias)
    assert conv_weight.shape == (nf * n_comp, C_in)
    assert conv_bias.shape == (nf * n_comp,)
    assert len(meta.vector_offsets) == nv
    # Dropout2d(p=0.0) in eval mode is the identity: nothing to do.

    # Fold the eval-mode per-field reorder [logb0 | confs | regs | scales] into the
    # weights (this also drops the n_vec-1 unused log-b rows of each field), so the
    # kernel writes a lane-dense output slab directly in the final channel layout.
    perm = []
    for f in range(nf):
        base = f * n_comp
        perm.append(base + nc + 2 * nv)                           # first reg log-b
        perm.extend(base + c for c in range(nc + 2 * nv))         # confidences + reg offsets
        perm.extend(base + nc + 3 * nv + s for s in range(ns))    # scales
    perm = np.asarray(perm, dtype=np.int32)
    C_outp = nf * n_out

    # MXU dtype: bf16-native matmul (f32 accumulate) when activations are f32.
    if x.dtype == jnp.bfloat16 or (x.dtype == jnp.float32 and mxu_bf16):
        mxu_dtype = np.dtype(jnp.bfloat16)
    else:
        mxu_dtype = np.dtype(x.dtype)
    w_p = conv_weight[perm].astype(mxu_dtype)                               # (C_outp, C_in)
    b_p = conv_bias[perm].astype(jnp.float32).reshape(C_outp, 1)            # (C_outp, 1)

    # Exact integer image coordinates, flattened; tiny stream (~2/C_in of the x stream).
    S = H * W
    pos = np.arange(S, dtype=np.int64)
    xy = jnp.asarray(np.stack([(pos % W).astype(np.float32),
                               (pos // W).astype(np.float32)]))             # (2, S)

    # --- VMEM-budget-derived spatial tile (safe across v5e / v6e / v7x) -------------
    x_item = np.dtype(x.dtype).itemsize
    resident_bytes = 2 * (C_outp * C_in * mxu_dtype.itemsize + C_outp * 4)  # worst case 2 bufs
    per_col = 2 * C_in * x_item + 2 * C_outp * 4 + 2 * 2 * 4                # x + f32 out + xy streams
    avail = max(vmem_budget_bytes - resident_bytes, 128 * per_col)
    cap_cols = max(128, min(max_tile, avail // per_col))
    tile_s = _pick_tile_s(S, B, cap_cols)
    grid = (B, pl.cdiv(S, tile_s))

    est_bytes = resident_bytes + per_col * tile_s + C_outp * tile_s * 4 + (1 << 20)
    vmem_limit = int(min(52 * 2**20, max(16 * 2**20, est_bytes * 5 // 4)))

    needs_xy = nv > 0 and any(meta.vector_offsets)

    def kernel(x_ref, w_ref, b_ref, xy_ref, o_ref):
        # x_ref: (C_in, TS) native dtype;  w_ref: (C_outp, C_in);  b_ref: (C_outp, 1) f32
        # xy_ref: (2, TS) f32;  o_ref: (C_outp, TS) f32 in the final channel layout.
        xt = x_ref[...]
        if xt.dtype != mxu_dtype:
            xt = xt.astype(mxu_dtype)                    # cheap VPU cast; MXU is bf16-native
        y = jnp.dot(w_ref[...], xt, preferred_element_type=jnp.float32)
        y = y + b_ref[...]                               # (C_outp, TS) f32

        # Bulk lane-dense store: log-b and all untouched rows are done; the few rows
        # below are rewritten in place (reads come back from the output VMEM block so
        # the big f32 temporary `y` dies here).
        o_ref[...] = y

        xy_t = xy_ref[...] if needs_xy else None         # (2, TS) coords of this tile

        # Per-field post-processing only on the rows that need it (static slices).
        for f in range(nf):
            base = f * n_out
            if nc:                                       # confidences -> sigmoid
                r = pl.ds(base + 1, nc)
                c = o_ref[r, :]
                o_ref[r, :] = pl.reciprocal(1.0 + jnp.exp(-c), approx=True)
            for i, do_offset in enumerate(meta.vector_offsets):
                if not do_offset:
                    continue                             # regression offsets -> + index field
                r = pl.ds(base + 1 + nc + 2 * i, 2)
                o_ref[r, :] = o_ref[r, :] + xy_t
            if ns:                                       # scales -> softplus (stable form)
                r = pl.ds(base + 1 + nc + 2 * nv, ns)
                s = o_ref[r, :]
                o_ref[r, :] = jnp.maximum(s, 0.0) + jnp.log(1.0 + jnp.exp(-jnp.abs(s)))

    x3 = x.reshape(B, C_in, S)                           # free reshape, native-dtype stream
    x_spec = pl.BlockSpec((None, C_in, tile_s), lambda b, s: (b, 0, s))
    xy_spec = pl.BlockSpec((2, tile_s), lambda b, s: (0, s))
    o_spec = pl.BlockSpec((None, C_outp, tile_s), lambda b, s: (b, 0, s))
    params = pltpu.CompilerParams(
        dimension_semantics=("parallel", "parallel"),
        vmem_limit_bytes=vmem_limit)

    def call(single_buffer_residents):
        # Residents have a constant index_map; single-buffer them to save VMEM.
        kw = dict(pipeline_mode=pl.Buffered(1)) if single_buffer_residents else {}
        w_spec = pl.BlockSpec((C_outp, C_in), lambda b, s: (0, 0), **kw)
        b_spec = pl.BlockSpec((C_outp, 1), lambda b, s: (0, 0), **kw)
        return pl.pallas_call(
            kernel,
            out_shape=jax.ShapeDtypeStruct((B, C_outp, S), jnp.float32),
            grid=grid,
            in_specs=[x_spec, w_spec, b_spec, xy_spec],
            out_specs=o_spec,
            compiler_params=params,
        )(x3, w_p, b_p, xy)

    use_single = hasattr(pl, "Buffered")
    try:
        out = call(use_single)
    except Exception:
        if not use_single:
            raise
        out = call(False)   # fallback: default double-buffered residents

    return out.reshape(B, nf, n_out, H, W)


def _reference_forward(x, conv_weight, conv_bias, meta):
    """Pure-JAX mirror of the PyTorch eval forward (inplace_ops branch)."""
    B, C_in, H, W = x.shape
    nf, nc, nv, ns = meta.n_fields, meta.n_confidences, meta.n_vectors, meta.n_scales
    n_comp = nc + 3 * nv + ns
    w = jnp.asarray(conv_weight, jnp.float32)
    if w.ndim == 4:
        w = w.reshape(w.shape[0], w.shape[1])
    y = jnp.einsum('oc,bchw->bohw', w, x.astype(jnp.float32),
                   precision=jax.lax.Precision.HIGHEST)
    y = y + jnp.asarray(conv_bias, jnp.float32)[None, :, None, None]
    y = y.reshape(B, nf, n_comp, H, W)
    conf = jax.nn.sigmoid(y[:, :, :nc])
    regs = y[:, :, nc:nc + 2 * nv]
    if nv > 0:
        xs = jnp.broadcast_to(jnp.arange(W, dtype=jnp.float32)[None, :], (H, W))
        ys = jnp.broadcast_to(jnp.arange(H, dtype=jnp.float32)[:, None], (H, W))
        xy = jnp.stack([xs, ys])                                           # (2, H, W)
        offs = jnp.concatenate(
            [xy if do else jnp.zeros_like(xy) for do in meta.vector_offsets], axis=0)
        regs = regs + offs[None, None]
    logb = y[:, :, nc + 2 * nv: nc + 2 * nv + 1]
    scales = jax.nn.softplus(y[:, :, nc + 3 * nv:])
    return jnp.concatenate([logb, conf, regs, scales], axis=2)


if __name__ == "__main__":
    key = jax.random.PRNGKey(0)

    def run_case(idx, meta, B, C_in, H, W, tol, **fwd_kwargs):
        n_comp = meta.n_confidences + 3 * meta.n_vectors + meta.n_scales
        n_out = 1 + meta.n_confidences + 2 * meta.n_vectors + meta.n_scales
        C_out = meta.n_fields * n_comp
        kx, kw, kb = jax.random.split(jax.random.fold_in(key, idx), 3)
        x = jax.random.normal(kx, (B, C_in, H, W), jnp.float32)
        conv_weight = jax.random.normal(kw, (C_out, C_in), jnp.float32) / np.sqrt(C_in)
        conv_bias = 0.1 * jax.random.normal(kb, (C_out,), jnp.float32)

        out = jax.block_until_ready(
            composite_field3_forward(x, conv_weight, conv_bias, meta, **fwd_kwargs))
        ref = jax.block_until_ready(
            _reference_forward(x, conv_weight, conv_bias, meta))

        assert out.shape == (B, meta.n_fields, n_out, H, W), (idx, out.shape)
        assert out.dtype == jnp.float32, (idx, out.dtype)
        err = float(jnp.max(jnp.abs(out - ref)))
        assert err < tol, f"case {idx}: max abs err {err} >= {tol}"

    meta_a = HeadMeta(n_fields=4, n_confidences=1, n_vectors=2, n_scales=1,
                      vector_offsets=(True, False))
    meta_b = HeadMeta(n_fields=3, n_confidences=2, n_vectors=1, n_scales=1,
                      vector_offsets=(True,))

    # 1) f32 MXU path, max_tile=128 -> grid (2, 2): exercises the spatial pipeline.
    run_case(0, meta_a, B=2, C_in=32, H=16, W=16, tol=2e-2,
             mxu_bf16=False, max_tile=128)
    # 2) default bf16 MXU path (f32 accumulate / f32 post-processing).
    run_case(1, meta_a, B=2, C_in=32, H=16, W=16, tol=5e-2)
    # 3) B=1, non-128-multiple spatial size (13x11): masked last tile + megacore split.
    run_case(2, meta_b, B=1, C_in=24, H=13, W=11, tol=2e-2, mxu_bf16=False)

    print("KERNEL_OK")
</pallas_src>

<mosaic_0001>
module attributes {stable_mosaic.version = 11 : i64} {
  func.func @kernel(%arg0: i32, %arg1: i32, %arg2: memref<1x32x128xf32, #tpu.memory_space<vmem>>, %arg3: memref<28x32xf32, #tpu.memory_space<vmem>>, %arg4: memref<28x1xf32, #tpu.memory_space<vmem>>, %arg5: memref<2x128xf32, #tpu.memory_space<vmem>>, %arg6: memref<1x28x128xf32, #tpu.memory_space<vmem>>) attributes {dimension_semantics = [#tpu.dimension_semantics<parallel>, #tpu.dimension_semantics<parallel>], iteration_bounds = array<i64: 2, 2>, scalar_prefetch = 0 : i64, scratch_operands = 0 : i64, tpu.core_type = #tpu.core_type<tc>, window_params = [{transform_indices = @transform_0, window_bounds = array<i64: 1, 32, 128>}, {pipeline_mode = #tpu.pipeline_mode<synchronous>, transform_indices = @transform_1, window_bounds = array<i64: 28, 32>}, {pipeline_mode = #tpu.pipeline_mode<synchronous>, transform_indices = @transform_2, window_bounds = array<i64: 28, 1>}, {transform_indices = @transform_3, window_bounds = array<i64: 2, 128>}, {transform_indices = @transform_4, window_bounds = array<i64: 1, 28, 128>}]} {
    %c0 = arith.constant 0 : index
    %c0_0 = arith.constant 0 : index
    %c0_1 = arith.constant 0 : index
    %0 = vector.load %arg2[%c0, %c0_0, %c0_1] : memref<1x32x128xf32, #tpu.memory_space<vmem>>, vector<1x32x128xf32>
    %1 = vector.shape_cast %0 : vector<1x32x128xf32> to vector<32x128xf32>
    %c0_2 = arith.constant 0 : index
    %c0_3 = arith.constant 0 : index
    %2 = vector.load %arg3[%c0_2, %c0_3] : memref<28x32xf32, #tpu.memory_space<vmem>>, vector<28x32xf32>
    %cst = arith.constant dense<0.000000e+00> : vector<28x128xf32>
    %3 = tpu.matmul %2, %1, %cst {dimension_numbers = #tpu.dot_dimension_numbers<[1], [0], [0], [1], [0, 0, 1, 1], [], []>} : vector<28x32xf32>, vector<32x128xf32>, vector<28x128xf32> -> vector<28x128xf32>
    %c0_4 = arith.constant 0 : index
    %c0_5 = arith.constant 0 : index
    %4 = vector.load %arg4[%c0_4, %c0_5] : memref<28x1xf32, #tpu.memory_space<vmem>>, vector<28x1xf32>
    %5 = vector.broadcast %4 : vector<28x1xf32> to vector<28x128xf32>
    %6 = arith.addf %3, %5 : vector<28x128xf32>
    %c0_6 = arith.constant 0 : index
    %c0_7 = arith.constant 0 : index
    %c0_8 = arith.constant 0 : index
    %7 = vector.load %arg6[%c0_6, %c0_7, %c0_8] : memref<1x28x128xf32, #tpu.memory_space<vmem>>, vector<1x28x128xf32>
    %8 = vector.shape_cast %7 : vector<1x28x128xf32> to vector<28x128xf32>
    %9 = vector.shape_cast %6 : vector<28x128xf32> to vector<1x28x128xf32>
    tpu.vector_store %arg6[%c0_6, %c0_7, %c0_8], %9 {strides = array<i32>} : memref<1x28x128xf32, #tpu.memory_space<vmem>>, vector<1x28x128xf32>,
    %c0_9 = arith.constant 0 : index
    %c0_10 = arith.constant 0 : index
    %10 = vector.load %arg5[%c0_9, %c0_10] : memref<2x128xf32, #tpu.memory_space<vmem>>, vector<2x128xf32>
    %c0_11 = arith.constant 0 : index
    %c1 = arith.constant 1 : index
    %c0_12 = arith.constant 0 : index
    %11 = vector.load %arg6[%c0_11, %c1, %c0_12] : memref<1x28x128xf32, #tpu.memory_space<vmem>>, vector<1x1x128xf32>
    %12 = vector.shape_cast %11 : vector<1x1x128xf32> to vector<1x128xf32>
    %cst_13 = arith.constant 0.000000e+00 : f32
    %13 = vector.broadcast %cst_13 : f32 to vector<1x128xf32>
    %14 = arith.subf %13, %12 : vector<1x128xf32>
    %15 = math.exp %14 : vector<1x128xf32>
    %cst_14 = arith.constant 1.000000e+00 : f32
    %16 = vector.broadcast %cst_14 : f32 to vector<1x128xf32>
    %17 = arith.addf %16, %15 : vector<1x128xf32>
    %18 = tpu.reciprocal %17 {approx = true} : vector<1x128xf32> -> vector<1x128xf32>
    %c0_15 = arith.constant 0 : index
    %c1_16 = arith.constant 1 : index
    %c0_17 = arith.constant 0 : index
    %19 = vector.load %arg6[%c0_15, %c1_16, %c0_17] : memref<1x28x128xf32, #tpu.memory_space<vmem>>, vector<1x1x128xf32>
    %20 = vector.shape_cast %19 : vector<1x1x128xf32> to vector<1x128xf32>
    %21 = vector.shape_cast %18 : vector<1x128xf32> to vector<1x1x128xf32>
    tpu.vector_store %arg6[%c0_15, %c1_16, %c0_17], %21 {strides = array<i32>} : memref<1x28x128xf32, #tpu.memory_space<vmem>>, vector<1x1x128xf32>,
    %c0_18 = arith.constant 0 : index
    %c2 = arith.constant 2 : index
    %c0_19 = arith.constant 0 : index
    %22 = vector.load %arg6[%c0_18, %c2, %c0_19] : memref<1x28x128xf32, #tpu.memory_space<vmem>>, vector<1x2x128xf32>
    %23 = vector.shape_cast %22 : vector<1x2x128xf32> to vector<2x128xf32>
    %24 = arith.addf %23, %10 : vector<2x128xf32>
    %c0_20 = arith.constant 0 : index
    %c2_21 = arith.constant 2 : index
    %c0_22 = arith.constant 0 : index
    %25 = vector.load %arg6[%c0_20, %c2_21, %c0_22] : memref<1x28x128xf32, #tpu.memory_space<vmem>>, vector<1x2x128xf32>
    %26 = vector.shape_cast %25 : vector<1x2x128xf32> to vector<2x128xf32>
    %27 = vector.shape_cast %24 : vector<2x128xf32> to vector<1x2x128xf32>
    tpu.vector_store %arg6[%c0_20, %c2_21, %c0_22], %27 {strides = array<i32>} : memref<1x28x128xf32, #tpu.memory_space<vmem>>, vector<1x2x128xf32>,
    %c0_23 = arith.constant 0 : index
    %c6 = arith.constant 6 : index
    %c0_24 = arith.constant 0 : index
    %28 = vector.load %arg6[%c0_23, %c6, %c0_24] : memref<1x28x128xf32, #tpu.memory_space<vmem>>, vector<1x1x128xf32>
    %29 = vector.shape_cast %28 : vector<1x1x128xf32> to vector<1x128xf32>
    %cst_25 = arith.constant 0.000000e+00 : f32
    %30 = vector.broadcast %cst_25 : f32 to vector<1x128xf32>
    %31 = arith.maximumf %29, %30 : vector<1x128xf32>
    %32 = math.absf %29 : vector<1x128xf32>
    %cst_26 = arith.constant 0.000000e+00 : f32
    %33 = vector.broadcast %cst_26 : f32 to vector<1x128xf32>
    %34 = arith.subf %33, %32 : vector<1x128xf32>
    %35 = math.exp %34 : vector<1x128xf32>
    %cst_27 = arith.constant 1.000000e+00 : f32
    %36 = vector.broadcast %cst_27 : f32 to vector<1x128xf32>
    %37 = arith.addf %36, %35 : vector<1x128xf32>
    %38 = math.log %37 : vector<1x128xf32>
    %39 = arith.addf %31, %38 : vector<1x128xf32>
    %c0_28 = arith.constant 0 : index
    %c6_29 = arith.constant 6 : index
    %c0_30 = arith.constant 0 : index
    %40 = vector.load %arg6[%c0_28, %c6_29, %c0_30] : memref<1x28x128xf32, #tpu.memory_space<vmem>>, vector<1x1x128xf32>
    %41 = vector.shape_cast %40 : vector<1x1x128xf32> to vector<1x128xf32>
    %42 = vector.shape_cast %39 : vector<1x128xf32> to vector<1x1x128xf32>
    tpu.vector_store %arg6[%c0_28, %c6_29, %c0_30], %42 {strides = array<i32>} : memref<1x28x128xf32, #tpu.memory_space<vmem>>, vector<1x1x128xf32>,
    %c0_31 = arith.constant 0 : index
    %c8 = arith.constant 8 : index
    %c0_32 = arith.constant 0 : index
    %43 = vector.load %arg6[%c0_31, %c8, %c0_32] : memref<1x28x128xf32, #tpu.memory_space<vmem>>, vector<1x1x128xf32>
    %44 = vector.shape_cast %43 : vector<1x1x128xf32> to vector<1x128xf32>
    %cst_33 = arith.constant 0.000000e+00 : f32
    %45 = vector.broadcast %cst_33 : f32 to vector<1x128xf32>
    %46 = arith.subf %45, %44 : vector<1x128xf32>
    %47 = math.exp %46 : vector<1x128xf32>
    %cst_34 = arith.constant 1.000000e+00 : f32
    %48 = vector.broadcast %cst_34 : f32 to vector<1x128xf32>
    %49 = arith.addf %48, %47 : vector<1x128xf32>
    %50 = tpu.reciprocal %49 {approx = true} : vector<1x128xf32> -> vector<1x128xf32>
    %c0_35 = arith.constant 0 : index
    %c8_36 = arith.constant 8 : index
    %c0_37 = arith.constant 0 : index
    %51 = vector.load %arg6[%c0_35, %c8_36, %c0_37] : memref<1x28x128xf32, #tpu.memory_space<vmem>>, vector<1x1x128xf32>
    %52 = vector.shape_cast %51 : vector<1x1x128xf32> to vector<1x128xf32>
    %53 = vector.shape_cast %50 : vector<1x128xf32> to vector<1x1x128xf32>
    tpu.vector_store %arg6[%c0_35, %c8_36, %c0_37], %53 {strides = array<i32>} : memref<1x28x128xf32, #tpu.memory_space<vmem>>, vector<1x1x128xf32>,
    %c0_38 = arith.constant 0 : index
    %c9 = arith.constant 9 : index
    %c0_39 = arith.constant 0 : index
    %54 = vector.load %arg6[%c0_38, %c9, %c0_39] : memref<1x28x128xf32, #tpu.memory_space<vmem>>, vector<1x2x128xf32>
    %55 = vector.shape_cast %54 : vector<1x2x128xf32> to vector<2x128xf32>
    %56 = arith.addf %55, %10 : vector<2x128xf32>
    %c0_40 = arith.constant 0 : index
    %c9_41 = arith.constant 9 : index
    %c0_42 = arith.constant 0 : index
    %57 = vector.load %arg6[%c0_40, %c9_41, %c0_42] : memref<1x28x128xf32, #tpu.memory_space<vmem>>, vector<1x2x128xf32>
    %58 = vector.shape_cast %57 : vector<1x2x128xf32> to vector<2x128xf32>
    %59 = vector.shape_cast %56 : vector<2x128xf32> to vector<1x2x128xf32>
    tpu.vector_store %arg6[%c0_40, %c9_41, %c0_42], %59 {strides = array<i32>} : memref<1x28x128xf32, #tpu.memory_space<vmem>>, vector<1x2x128xf32>,
    %c0_43 = arith.constant 0 : index
    %c13 = arith.constant 13 : index
    %c0_44 = arith.constant 0 : index
    %60 = vector.load %arg6[%c0_43, %c13, %c0_44] : memref<1x28x128xf32, #tpu.memory_space<vmem>>, vector<1x1x128xf32>
    %61 = vector.shape_cast %60 : vector<1x1x128xf32> to vector<1x128xf32>
    %cst_45 = arith.constant 0.000000e+00 : f32
    %62 = vector.broadcast %cst_45 : f32 to vector<1x128xf32>
    %63 = arith.maximumf %61, %62 : vector<1x128xf32>
    %64 = math.absf %61 : vector<1x128xf32>
    %cst_46 = arith.constant 0.000000e+00 : f32
    %65 = vector.broadcast %cst_46 : f32 to vector<1x128xf32>
    %66 = arith.subf %65, %64 : vector<1x128xf32>
    %67 = math.exp %66 : vector<1x128xf32>
    %cst_47 = arith.constant 1.000000e+00 : f32
    %68 = vector.broadcast %cst_47 : f32 to vector<1x128xf32>
    %69 = arith.addf %68, %67 : vector<1x128xf32>
    %70 = math.log %69 : vector<1x128xf32>
    %71 = arith.addf %63, %70 : vector<1x128xf32>
    %c0_48 = arith.constant 0 : index
    %c13_49 = arith.constant 13 : index
    %c0_50 = arith.constant 0 : index
    %72 = vector.load %arg6[%c0_48, %c13_49, %c0_50] : memref<1x28x128xf32, #tpu.memory_space<vmem>>, vector<1x1x128xf32>
    %73 = vector.shape_cast %72 : vector<1x1x128xf32> to vector<1x128xf32>
    %74 = vector.shape_cast %71 : vector<1x128xf32> to vector<1x1x128xf32>
    tpu.vector_store %arg6[%c0_48, %c13_49, %c0_50], %74 {strides = array<i32>} : memref<1x28x128xf32, #tpu.memory_space<vmem>>, vector<1x1x128xf32>,
    %c0_51 = arith.constant 0 : index
    %c15 = arith.constant 15 : index
    %c0_52 = arith.constant 0 : index
    %75 = vector.load %arg6[%c0_51, %c15, %c0_52] : memref<1x28x128xf32, #tpu.memory_space<vmem>>, vector<1x1x128xf32>
    %76 = vector.shape_cast %75 : vector<1x1x128xf32> to vector<1x128xf32>
    %cst_53 = arith.constant 0.000000e+00 : f32
    %77 = vector.broadcast %cst_53 : f32 to vector<1x128xf32>
    %78 = arith.subf %77, %76 : vector<1x128xf32>
    %79 = math.exp %78 : vector<1x128xf32>
    %cst_54 = arith.constant 1.000000e+00 : f32
    %80 = vector.broadcast %cst_54 : f32 to vector<1x128xf32>
    %81 = arith.addf %80, %79 : vector<1x128xf32>
    %82 = tpu.reciprocal %81 {approx = true} : vector<1x128xf32> -> vector<1x128xf32>
    %c0_55 = arith.constant 0 : index
    %c15_56 = arith.constant 15 : index
    %c0_57 = arith.constant 0 : index
    %83 = vector.load %arg6[%c0_55, %c15_56, %c0_57] : memref<1x28x128xf32, #tpu.memory_space<vmem>>, vector<1x1x128xf32>
    %84 = vector.shape_cast %83 : vector<1x1x128xf32> to vector<1x128xf32>
    %85 = vector.shape_cast %82 : vector<1x128xf32> to vector<1x1x128xf32>
    tpu.vector_store %arg6[%c0_55, %c15_56, %c0_57], %85 {strides = array<i32>} : memref<1x28x128xf32, #tpu.memory_space<vmem>>, vector<1x1x128xf32>,
    %c0_58 = arith.constant 0 : index
    %c16 = arith.constant 16 : index
    %c0_59 = arith.constant 0 : index
    %86 = vector.load %arg6[%c0_58, %c16, %c0_59] : memref<1x28x128xf32, #tpu.memory_space<vmem>>, vector<1x2x128xf32>
    %87 = vector.shape_cast %86 : vector<1x2x128xf32> to vector<2x128xf32>
    %88 = arith.addf %87, %10 : vector<2x128xf32>
    %c0_60 = arith.constant 0 : index
    %c16_61 = arith.constant 16 : index
    %c0_62 = arith.constant 0 : index
    %89 = vector.load %arg6[%c0_60, %c16_61, %c0_62] : memref<1x28x128xf32, #tpu.memory_space<vmem>>, vector<1x2x128xf32>
    %90 = vector.shape_cast %89 : vector<1x2x128xf32> to vector<2x128xf32>
    %91 = vector.shape_cast %88 : vector<2x128xf32> to vector<1x2x128xf32>
    tpu.vector_store %arg6[%c0_60, %c16_61, %c0_62], %91 {strides = array<i32>} : memref<1x28x128xf32, #tpu.memory_space<vmem>>, vector<1x2x128xf32>,
    %c0_63 = arith.constant 0 : index
    %c20 = arith.constant 20 : index
    %c0_64 = arith.constant 0 : index
    %92 = vector.load %arg6[%c0_63, %c20, %c0_64] : memref<1x28x128xf32, #tpu.memory_space<vmem>>, vector<1x1x128xf32>
    %93 = vector.shape_cast %92 : vector<1x1x128xf32> to vector<1x128xf32>
    %cst_65 = arith.constant 0.000000e+00 : f32
    %94 = vector.broadcast %cst_65 : f32 to vector<1x128xf32>
    %95 = arith.maximumf %93, %94 : vector<1x128xf32>
    %96 = math.absf %93 : vector<1x128xf32>
    %cst_66 = arith.constant 0.000000e+00 : f32
    %97 = vector.broadcast %cst_66 : f32 to vector<1x128xf32>
    %98 = arith.subf %97, %96 : vector<1x128xf32>
    %99 = math.exp %98 : vector<1x128xf32>
    %cst_67 = arith.constant 1.000000e+00 : f32
    %100 = vector.broadcast %cst_67 : f32 to vector<1x128xf32>
    %101 = arith.addf %100, %99 : vector<1x128xf32>
    %102 = math.log %101 : vector<1x128xf32>
    %103 = arith.addf %95, %102 : vector<1x128xf32>
    %c0_68 = arith.constant 0 : index
    %c20_69 = arith.constant 20 : index
    %c0_70 = arith.constant 0 : index
    %104 = vector.load %arg6[%c0_68, %c20_69, %c0_70] : memref<1x28x128xf32, #tpu.memory_space<vmem>>, vector<1x1x128xf32>
    %105 = vector.shape_cast %104 : vector<1x1x128xf32> to vector<1x128xf32>
    %106 = vector.shape_cast %103 : vector<1x128xf32> to vector<1x1x128xf32>
    tpu.vector_store %arg6[%c0_68, %c20_69, %c0_70], %106 {strides = array<i32>} : memref<1x28x128xf32, #tpu.memory_space<vmem>>, vector<1x1x128xf32>,
    %c0_71 = arith.constant 0 : index
    %c22 = arith.constant 22 : index
    %c0_72 = arith.constant 0 : index
    %107 = vector.load %arg6[%c0_71, %c22, %c0_72] : memref<1x28x128xf32, #tpu.memory_space<vmem>>, vector<1x1x128xf32>
    %108 = vector.shape_cast %107 : vector<1x1x128xf32> to vector<1x128xf32>
    %cst_73 = arith.constant 0.000000e+00 : f32
    %109 = vector.broadcast %cst_73 : f32 to vector<1x128xf32>
    %110 = arith.subf %109, %108 : vector<1x128xf32>
    %111 = math.exp %110 : vector<1x128xf32>
    %cst_74 = arith.constant 1.000000e+00 : f32
    %112 = vector.broadcast %cst_74 : f32 to vector<1x128xf32>
    %113 = arith.addf %112, %111 : vector<1x128xf32>
    %114 = tpu.reciprocal %113 {approx = true} : vector<1x128xf32> -> vector<1x128xf32>
    %c0_75 = arith.constant 0 : index
    %c22_76 = arith.constant 22 : index
    %c0_77 = arith.constant 0 : index
    %115 = vector.load %arg6[%c0_75, %c22_76, %c0_77] : memref<1x28x128xf32, #tpu.memory_space<vmem>>, vector<1x1x128xf32>
    %116 = vector.shape_cast %115 : vector<1x1x128xf32> to vector<1x128xf32>
    %117 = vector.shape_cast %114 : vector<1x128xf32> to vector<1x1x128xf32>
    tpu.vector_store %arg6[%c0_75, %c22_76, %c0_77], %117 {strides = array<i32>} : memref<1x28x128xf32, #tpu.memory_space<vmem>>, vector<1x1x128xf32>,
    %c0_78 = arith.constant 0 : index
    %c23 = arith.constant 23 : index
    %c0_79 = arith.constant 0 : index
    %118 = vector.load %arg6[%c0_78, %c23, %c0_79] : memref<1x28x128xf32, #tpu.memory_space<vmem>>, vector<1x2x128xf32>
    %119 = vector.shape_cast %118 : vector<1x2x128xf32> to vector<2x128xf32>
    %120 = arith.addf %119, %10 : vector<2x128xf32>
    %c0_80 = arith.constant 0 : index
    %c23_81 = arith.constant 23 : index
    %c0_82 = arith.constant 0 : index
    %121 = vector.load %arg6[%c0_80, %c23_81, %c0_82] : memref<1x28x128xf32, #tpu.memory_space<vmem>>, vector<1x2x128xf32>
    %122 = vector.shape_cast %121 : vector<1x2x128xf32> to vector<2x128xf32>
    %123 = vector.shape_cast %120 : vector<2x128xf32> to vector<1x2x128xf32>
    tpu.vector_store %arg6[%c0_80, %c23_81, %c0_82], %123 {strides = array<i32>} : memref<1x28x128xf32, #tpu.memory_space<vmem>>, vector<1x2x128xf32>,
    %c0_83 = arith.constant 0 : index
    %c27 = arith.constant 27 : index
    %c0_84 = arith.constant 0 : index
    %124 = vector.load %arg6[%c0_83, %c27, %c0_84] : memref<1x28x128xf32, #tpu.memory_space<vmem>>, vector<1x1x128xf32>
    %125 = vector.shape_cast %124 : vector<1x1x128xf32> to vector<1x128xf32>
    %cst_85 = arith.constant 0.000000e+00 : f32
    %126 = vector.broadcast %cst_85 : f32 to vector<1x128xf32>
    %127 = arith.maximumf %125, %126 : vector<1x128xf32>
    %128 = math.absf %125 : vector<1x128xf32>
    %cst_86 = arith.constant 0.000000e+00 : f32
    %129 = vector.broadcast %cst_86 : f32 to vector<1x128xf32>
    %130 = arith.subf %129, %128 : vector<1x128xf32>
    %131 = math.exp %130 : vector<1x128xf32>
    %cst_87 = arith.constant 1.000000e+00 : f32
    %132 = vector.broadcast %cst_87 : f32 to vector<1x128xf32>
    %133 = arith.addf %132, %131 : vector<1x128xf32>
    %134 = math.log %133 : vector<1x128xf32>
    %135 = arith.addf %127, %134 : vector<1x128xf32>
    %c0_88 = arith.constant 0 : index
    %c27_89 = arith.constant 27 : index
    %c0_90 = arith.constant 0 : index
    %136 = vector.load %arg6[%c0_88, %c27_89, %c0_90] : memref<1x28x128xf32, #tpu.memory_space<vmem>>, vector<1x1x128xf32>
    %137 = vector.shape_cast %136 : vector<1x1x128xf32> to vector<1x128xf32>
    %138 = vector.shape_cast %135 : vector<1x128xf32> to vector<1x1x128xf32>
    tpu.vector_store %arg6[%c0_88, %c27_89, %c0_90], %138 {strides = array<i32>} : memref<1x28x128xf32, #tpu.memory_space<vmem>>, vector<1x1x128xf32>,
    return
  }
  func.func @transform_0(%arg0: i32, %arg1: i32) -> (i32, i32, i32) {
    %c0_i32 = arith.constant 0 : i32
    %c0_i32_0 = arith.constant 0 : i32
    return %arg0, %c0_i32, %arg1 : i32, i32, i32
  }
  func.func @transform_1(%arg0: i32, %arg1: i32) -> (i32, i32) {
    %c0_i32 = arith.constant 0 : i32
    %c0_i32_0 = arith.constant 0 : i32
    %c0_i32_1 = arith.constant 0 : i32
    return %c0_i32, %c0_i32_0 : i32, i32
  }
  func.func @transform_2(%arg0: i32, %arg1: i32) -> (i32, i32) {
    %c0_i32 = arith.constant 0 : i32
    %c0_i32_0 = arith.constant 0 : i32
    %c0_i32_1 = arith.constant 0 : i32
    return %c0_i32, %c0_i32_0 : i32, i32
  }
  func.func @transform_3(%arg0: i32, %arg1: i32) -> (i32, i32) {
    %c0_i32 = arith.constant 0 : i32
    %c0_i32_0 = arith.constant 0 : i32
    return %c0_i32, %arg1 : i32, i32
  }
  func.func @transform_4(%arg0: i32, %arg1: i32) -> (i32, i32, i32) {
    %c0_i32 = arith.constant 0 : i32
    %c0_i32_0 = arith.constant 0 : i32
    return %arg0, %c0_i32, %arg1 : i32, i32, i32
  }
}

module attributes {stable_mosaic.version = 11 : i64} {
  func.func @kernel(%arg0: i32, %arg1: i32, %arg2: memref<1x32x128xf32, #tpu.memory_space<vmem>>, %arg3: memref<28x32xf32, #tpu.memory_space<vmem>>, %arg4: memref<28x1xf32, #tpu.memory_space<vmem>>, %arg5: memref<2x128xf32, #tpu.memory_space<vmem>>, %arg6: memref<1x28x128xf32, #tpu.memory_space<vmem>>) attributes {dimension_semantics = [#tpu.dimension_semantics<parallel>, #tpu.dimension_semantics<parallel>], iteration_bounds = array<i64: 2, 2>, scalar_prefetch = 0 : i64, scratch_operands = 0 : i64, tpu.core_type = #tpu.core_type<tc>, window_params = [{transform_indices = @transform_0, window_bounds = array<i64: 1, 32, 128>}, {pipeline_mode = #tpu.pipeline_mode<synchronous>, transform_indices = @transform_1, window_bounds = array<i64: 28, 32>}, {pipeline_mode = #tpu.pipeline_mode<synchronous>, transform_indices = @transform_2, window_bounds = array<i64: 28, 1>}, {transform_indices = @transform_3, window_bounds = array<i64: 2, 128>}, {transform_indices = @transform_4, window_bounds = array<i64: 1, 28, 128>}]} {
    %c0 = arith.constant 0 : index
    %c0_0 = arith.constant 0 : index
    %c0_1 = arith.constant 0 : index
    %0 = vector.load %arg2[%c0, %c0_0, %c0_1] : memref<1x32x128xf32, #tpu.memory_space<vmem>>, vector<1x32x128xf32>
    %1 = vector.shape_cast %0 : vector<1x32x128xf32> to vector<32x128xf32>
    %c0_2 = arith.constant 0 : index
    %c0_3 = arith.constant 0 : index
    %2 = vector.load %arg3[%c0_2, %c0_3] : memref<28x32xf32, #tpu.memory_space<vmem>>, vector<28x32xf32>
    %cst = arith.constant dense<0.000000e+00> : vector<28x128xf32>
    %3 = tpu.matmul %2, %1, %cst {dimension_numbers = #tpu.dot_dimension_numbers<[1], [0], [0], [1], [0, 0, 1, 1], [], []>} : vector<28x32xf32>, vector<32x128xf32>, vector<28x128xf32> -> vector<28x128xf32>
    %c0_4 = arith.constant 0 : index
    %c0_5 = arith.constant 0 : index
    %4 = vector.load %arg4[%c0_4, %c0_5] : memref<28x1xf32, #tpu.memory_space<vmem>>, vector<28x1xf32>
    %5 = vector.broadcast %4 : vector<28x1xf32> to vector<28x128xf32>
    %6 = arith.addf %3, %5 : vector<28x128xf32>
    %c0_6 = arith.constant 0 : index
    %c0_7 = arith.constant 0 : index
    %c0_8 = arith.constant 0 : index
    %7 = vector.load %arg6[%c0_6, %c0_7, %c0_8] : memref<1x28x128xf32, #tpu.memory_space<vmem>>, vector<1x28x128xf32>
    %8 = vector.shape_cast %7 : vector<1x28x128xf32> to vector<28x128xf32>
    %9 = vector.shape_cast %6 : vector<28x128xf32> to vector<1x28x128xf32>
    tpu.vector_store %arg6[%c0_6, %c0_7, %c0_8], %9 {strides = array<i32>} : memref<1x28x128xf32, #tpu.memory_space<vmem>>, vector<1x28x128xf32>,
    %c0_9 = arith.constant 0 : index
    %c0_10 = arith.constant 0 : index
    %10 = vector.load %arg5[%c0_9, %c0_10] : memref<2x128xf32, #tpu.memory_space<vmem>>, vector<2x128xf32>
    %c0_11 = arith.constant 0 : index
    %c1 = arith.constant 1 : index
    %c0_12 = arith.constant 0 : index
    %11 = vector.load %arg6[%c0_11, %c1, %c0_12] : memref<1x28x128xf32, #tpu.memory_space<vmem>>, vector<1x1x128xf32>
    %12 = vector.shape_cast %11 : vector<1x1x128xf32> to vector<1x128xf32>
    %cst_13 = arith.constant 0.000000e+00 : f32
    %13 = vector.broadcast %cst_13 : f32 to vector<1x128xf32>
    %14 = arith.subf %13, %12 : vector<1x128xf32>
    %15 = math.exp %14 : vector<1x128xf32>
    %cst_14 = arith.constant 1.000000e+00 : f32
    %16 = vector.broadcast %cst_14 : f32 to vector<1x128xf32>
    %17 = arith.addf %16, %15 : vector<1x128xf32>
    %18 = tpu.reciprocal %17 {approx = true} : vector<1x128xf32> -> vector<1x128xf32>
    %c0_15 = arith.constant 0 : index
    %c1_16 = arith.constant 1 : index
    %c0_17 = arith.constant 0 : index
    %19 = vector.load %arg6[%c0_15, %c1_16, %c0_17] : memref<1x28x128xf32, #tpu.memory_space<vmem>>, vector<1x1x128xf32>
    %20 = vector.shape_cast %19 : vector<1x1x128xf32> to vector<1x128xf32>
    %21 = vector.shape_cast %18 : vector<1x128xf32> to vector<1x1x128xf32>
    tpu.vector_store %arg6[%c0_15, %c1_16, %c0_17], %21 {strides = array<i32>} : memref<1x28x128xf32, #tpu.memory_space<vmem>>, vector<1x1x128xf32>,
    %c0_18 = arith.constant 0 : index
    %c2 = arith.constant 2 : index
    %c0_19 = arith.constant 0 : index
    %22 = vector.load %arg6[%c0_18, %c2, %c0_19] : memref<1x28x128xf32, #tpu.memory_space<vmem>>, vector<1x2x128xf32>
    %23 = vector.shape_cast %22 : vector<1x2x128xf32> to vector<2x128xf32>
    %24 = arith.addf %23, %10 : vector<2x128xf32>
    %c0_20 = arith.constant 0 : index
    %c2_21 = arith.constant 2 : index
    %c0_22 = arith.constant 0 : index
    %25 = vector.load %arg6[%c0_20, %c2_21, %c0_22] : memref<1x28x128xf32, #tpu.memory_space<vmem>>, vector<1x2x128xf32>
    %26 = vector.shape_cast %25 : vector<1x2x128xf32> to vector<2x128xf32>
    %27 = vector.shape_cast %24 : vector<2x128xf32> to vector<1x2x128xf32>
    tpu.vector_store %arg6[%c0_20, %c2_21, %c0_22], %27 {strides = array<i32>} : memref<1x28x128xf32, #tpu.memory_space<vmem>>, vector<1x2x128xf32>,
    %c0_23 = arith.constant 0 : index
    %c6 = arith.constant 6 : index
    %c0_24 = arith.constant 0 : index
    %28 = vector.load %arg6[%c0_23, %c6, %c0_24] : memref<1x28x128xf32, #tpu.memory_space<vmem>>, vector<1x1x128xf32>
    %29 = vector.shape_cast %28 : vector<1x1x128xf32> to vector<1x128xf32>
    %cst_25 = arith.constant 0.000000e+00 : f32
    %30 = vector.broadcast %cst_25 : f32 to vector<1x128xf32>
    %31 = arith.maximumf %29, %30 : vector<1x128xf32>
    %32 = math.absf %29 : vector<1x128xf32>
    %cst_26 = arith.constant 0.000000e+00 : f32
    %33 = vector.broadcast %cst_26 : f32 to vector<1x128xf32>
    %34 = arith.subf %33, %32 : vector<1x128xf32>
    %35 = math.exp %34 : vector<1x128xf32>
    %cst_27 = arith.constant 1.000000e+00 : f32
    %36 = vector.broadcast %cst_27 : f32 to vector<1x128xf32>
    %37 = arith.addf %36, %35 : vector<1x128xf32>
    %38 = math.log %37 : vector<1x128xf32>
    %39 = arith.addf %31, %38 : vector<1x128xf32>
    %c0_28 = arith.constant 0 : index
    %c6_29 = arith.constant 6 : index
    %c0_30 = arith.constant 0 : index
    %40 = vector.load %arg6[%c0_28, %c6_29, %c0_30] : memref<1x28x128xf32, #tpu.memory_space<vmem>>, vector<1x1x128xf32>
    %41 = vector.shape_cast %40 : vector<1x1x128xf32> to vector<1x128xf32>
    %42 = vector.shape_cast %39 : vector<1x128xf32> to vector<1x1x128xf32>
    tpu.vector_store %arg6[%c0_28, %c6_29, %c0_30], %42 {strides = array<i32>} : memref<1x28x128xf32, #tpu.memory_space<vmem>>, vector<1x1x128xf32>,
    %c0_31 = arith.constant 0 : index
    %c8 = arith.constant 8 : index
    %c0_32 = arith.constant 0 : index
    %43 = vector.load %arg6[%c0_31, %c8, %c0_32] : memref<1x28x128xf32, #tpu.memory_space<vmem>>, vector<1x1x128xf32>
    %44 = vector.shape_cast %43 : vector<1x1x128xf32> to vector<1x128xf32>
    %cst_33 = arith.constant 0.000000e+00 : f32
    %45 = vector.broadcast %cst_33 : f32 to vector<1x128xf32>
    %46 = arith.subf %45, %44 : vector<1x128xf32>
    %47 = math.exp %46 : vector<1x128xf32>
    %cst_34 = arith.constant 1.000000e+00 : f32
    %48 = vector.broadcast %cst_34 : f32 to vector<1x128xf32>
    %49 = arith.addf %48, %47 : vector<1x128xf32>
    %50 = tpu.reciprocal %49 {approx = true} : vector<1x128xf32> -> vector<1x128xf32>
    %c0_35 = arith.constant 0 : index
    %c8_36 = arith.constant 8 : index
    %c0_37 = arith.constant 0 : index
    %51 = vector.load %arg6[%c0_35, %c8_36, %c0_37] : memref<1x28x128xf32, #tpu.memory_space<vmem>>, vector<1x1x128xf32>
    %52 = vector.shape_cast %51 : vector<1x1x128xf32> to vector<1x128xf32>
    %53 = vector.shape_cast %50 : vector<1x128xf32> to vector<1x1x128xf32>
    tpu.vector_store %arg6[%c0_35, %c8_36, %c0_37], %53 {strides = array<i32>} : memref<1x28x128xf32, #tpu.memory_space<vmem>>, vector<1x1x128xf32>,
    %c0_38 = arith.constant 0 : index
    %c9 = arith.constant 9 : index
    %c0_39 = arith.constant 0 : index
    %54 = vector.load %arg6[%c0_38, %c9, %c0_39] : memref<1x28x128xf32, #tpu.memory_space<vmem>>, vector<1x2x128xf32>
    %55 = vector.shape_cast %54 : vector<1x2x128xf32> to vector<2x128xf32>
    %56 = arith.addf %55, %10 : vector<2x128xf32>
    %c0_40 = arith.constant 0 : index
    %c9_41 = arith.constant 9 : index
    %c0_42 = arith.constant 0 : index
    %57 = vector.load %arg6[%c0_40, %c9_41, %c0_42] : memref<1x28x128xf32, #tpu.memory_space<vmem>>, vector<1x2x128xf32>
    %58 = vector.shape_cast %57 : vector<1x2x128xf32> to vector<2x128xf32>
    %59 = vector.shape_cast %56 : vector<2x128xf32> to vector<1x2x128xf32>
    tpu.vector_store %arg6[%c0_40, %c9_41, %c0_42], %59 {strides = array<i32>} : memref<1x28x128xf32, #tpu.memory_space<vmem>>, vector<1x2x128xf32>,
    %c0_43 = arith.constant 0 : index
    %c13 = arith.constant 13 : index
    %c0_44 = arith.constant 0 : index
    %60 = vector.load %arg6[%c0_43, %c13, %c0_44] : memref<1x28x128xf32, #tpu.memory_space<vmem>>, vector<1x1x128xf32>
    %61 = vector.shape_cast %60 : vector<1x1x128xf32> to vector<1x128xf32>
    %cst_45 = arith.constant 0.000000e+00 : f32
    %62 = vector.broadcast %cst_45 : f32 to vector<1x128xf32>
    %63 = arith.maximumf %61, %62 : vector<1x128xf32>
    %64 = math.absf %61 : vector<1x128xf32>
    %cst_46 = arith.constant 0.000000e+00 : f32
    %65 = vector.broadcast %cst_46 : f32 to vector<1x128xf32>
    %66 = arith.subf %65, %64 : vector<1x128xf32>
    %67 = math.exp %66 : vector<1x128xf32>
    %cst_47 = arith.constant 1.000000e+00 : f32
    %68 = vector.broadcast %cst_47 : f32 to vector<1x128xf32>
    %69 = arith.addf %68, %67 : vector<1x128xf32>
    %70 = math.log %69 : vector<1x128xf32>
    %71 = arith.addf %63, %70 : vector<1x128xf32>
    %c0_48 = arith.constant 0 : index
    %c13_49 = arith.constant 13 : index
    %c0_50 = arith.constant 0 : index
    %72 = vector.load %arg6[%c0_48, %c13_49, %c0_50] : memref<1x28x128xf32, #tpu.memory_space<vmem>>, vector<1x1x128xf32>
    %73 = vector.shape_cast %72 : vector<1x1x128xf32> to vector<1x128xf32>
    %74 = vector.shape_cast %71 : vector<1x128xf32> to vector<1x1x128xf32>
    tpu.vector_store %arg6[%c0_48, %c13_49, %c0_50], %74 {strides = array<i32>} : memref<1x28x128xf32, #tpu.memory_space<vmem>>, vector<1x1x128xf32>,
    %c0_51 = arith.constant 0 : index
    %c15 = arith.constant 15 : index
    %c0_52 = arith.constant 0 : index
    %75 = vector.load %arg6[%c0_51, %c15, %c0_52] : memref<1x28x128xf32, #tpu.memory_space<vmem>>, vector<1x1x128xf32>
    %76 = vector.shape_cast %75 : vector<1x1x128xf32> to vector<1x128xf32>
    %cst_53 = arith.constant 0.000000e+00 : f32
    %77 = vector.broadcast %cst_53 : f32 to vector<1x128xf32>
    %78 = arith.subf %77, %76 : vector<1x128xf32>
    %79 = math.exp %78 : vector<1x128xf32>
    %cst_54 = arith.constant 1.000000e+00 : f32
    %80 = vector.broadcast %cst_54 : f32 to vector<1x128xf32>
    %81 = arith.addf %80, %79 : vector<1x128xf32>
    %82 = tpu.reciprocal %81 {approx = true} : vector<1x128xf32> -> vector<1x128xf32>
    %c0_55 = arith.constant 0 : index
    %c15_56 = arith.constant 15 : index
    %c0_57 = arith.constant 0 : index
    %83 = vector.load %arg6[%c0_55, %c15_56, %c0_57] : memref<1x28x128xf32, #tpu.memory_space<vmem>>, vector<1x1x128xf32>
    %84 = vector.shape_cast %83 : vector<1x1x128xf32> to vector<1x128xf32>
    %85 = vector.shape_cast %82 : vector<1x128xf32> to vector<1x1x128xf32>
    tpu.vector_store %arg6[%c0_55, %c15_56, %c0_57], %85 {strides = array<i32>} : memref<1x28x128xf32, #tpu.memory_space<vmem>>, vector<1x1x128xf32>,
    %c0_58 = arith.constant 0 : index
    %c16 = arith.constant 16 : index
    %c0_59 = arith.constant 0 : index
    %86 = vector.load %arg6[%c0_58, %c16, %c0_59] : memref<1x28x128xf32, #tpu.memory_space<vmem>>, vector<1x2x128xf32>
    %87 = vector.shape_cast %86 : vector<1x2x128xf32> to vector<2x128xf32>
    %88 = arith.addf %87, %10 : vector<2x128xf32>
    %c0_60 = arith.constant 0 : index
    %c16_61 = arith.constant 16 : index
    %c0_62 = arith.constant 0 : index
    %89 = vector.load %arg6[%c0_60, %c16_61, %c0_62] : memref<1x28x128xf32, #tpu.memory_space<vmem>>, vector<1x2x128xf32>
    %90 = vector.shape_cast %89 : vector<1x2x128xf32> to vector<2x128xf32>
    %91 = vector.shape_cast %88 : vector<2x128xf32> to vector<1x2x128xf32>
    tpu.vector_store %arg6[%c0_60, %c16_61, %c0_62], %91 {strides = array<i32>} : memref<1x28x128xf32, #tpu.memory_space<vmem>>, vector<1x2x128xf32>,
    %c0_63 = arith.constant 0 : index
    %c20 = arith.constant 20 : index
    %c0_64 = arith.constant 0 : index
    %92 = vector.load %arg6[%c0_63, %c20, %c0_64] : memref<1x28x128xf32, #tpu.memory_space<vmem>>, vector<1x1x128xf32>
    %93 = vector.shape_cast %92 : vector<1x1x128xf32> to vector<1x128xf32>
    %cst_65 = arith.constant 0.000000e+00 : f32
    %94 = vector.broadcast %cst_65 : f32 to vector<1x128xf32>
    %95 = arith.maximumf %93, %94 : vector<1x128xf32>
    %96 = math.absf %93 : vector<1x128xf32>
    %cst_66 = arith.constant 0.000000e+00 : f32
    %97 = vector.broadcast %cst_66 : f32 to vector<1x128xf32>
    %98 = arith.subf %97, %96 : vector<1x128xf32>
    %99 = math.exp %98 : vector<1x128xf32>
    %cst_67 = arith.constant 1.000000e+00 : f32
    %100 = vector.broadcast %cst_67 : f32 to vector<1x128xf32>
    %101 = arith.addf %100, %99 : vector<1x128xf32>
    %102 = math.log %101 : vector<1x128xf32>
    %103 = arith.addf %95, %102 : vector<1x128xf32>
    %c0_68 = arith.constant 0 : index
    %c20_69 = arith.constant 20 : index
    %c0_70 = arith.constant 0 : index
    %104 = vector.load %arg6[%c0_68, %c20_69, %c0_70] : memref<1x28x128xf32, #tpu.memory_space<vmem>>, vector<1x1x128xf32>
    %105 = vector.shape_cast %104 : vector<1x1x128xf32> to vector<1x128xf32>
    %106 = vector.shape_cast %103 : vector<1x128xf32> to vector<1x1x128xf32>
    tpu.vector_store %arg6[%c0_68, %c20_69, %c0_70], %106 {strides = array<i32>} : memref<1x28x128xf32, #tpu.memory_space<vmem>>, vector<1x1x128xf32>,
    %c0_71 = arith.constant 0 : index
    %c22 = arith.constant 22 : index
    %c0_72 = arith.constant 0 : index
    %107 = vector.load %arg6[%c0_71, %c22, %c0_72] : memref<1x28x128xf32, #tpu.memory_space<vmem>>, vector<1x1x128xf32>
    %108 = vector.shape_cast %107 : vector<1x1x128xf32> to vector<1x128xf32>
    %cst_73 = arith.constant 0.000000e+00 : f32
    %109 = vector.broadcast %cst_73 : f32 to vector<1x128xf32>
    %110 = arith.subf %109, %108 : vector<1x128xf32>
    %111 = math.exp %110 : vector<1x128xf32>
    %cst_74 = arith.constant 1.000000e+00 : f32
    %112 = vector.broadcast %cst_74 : f32 to vector<1x128xf32>
    %113 = arith.addf %112, %111 : vector<1x128xf32>
    %114 = tpu.reciprocal %113 {approx = true} : vector<1x128xf32> -> vector<1x128xf32>
    %c0_75 = arith.constant 0 : index
    %c22_76 = arith.constant 22 : index
    %c0_77 = arith.constant 0 : index
    %115 = vector.load %arg6[%c0_75, %c22_76, %c0_77] : memref<1x28x128xf32, #tpu.memory_space<vmem>>, vector<1x1x128xf32>
    %116 = vector.shape_cast %115 : vector<1x1x128xf32> to vector<1x128xf32>
    %117 = vector.shape_cast %114 : vector<1x128xf32> to vector<1x1x128xf32>
    tpu.vector_store %arg6[%c0_75, %c22_76, %c0_77], %117 {strides = array<i32>} : memref<1x28x128xf32, #tpu.memory_space<vmem>>, vector<1x1x128xf32>,
    %c0_78 = arith.constant 0 : index
    %c23 = arith.constant 23 : index
    %c0_79 = arith.constant 0 : index
    %118 = vector.load %arg6[%c0_78, %c23, %c0_79] : memref<1x28x128xf32, #tpu.memory_space<vmem>>, vector<1x2x128xf32>
    %119 = vector.shape_cast %118 : vector<1x2x128xf32> to vector<2x128xf32>
    %120 = arith.addf %119, %10 : vector<2x128xf32>
    %c0_80 = arith.constant 0 : index
    %c23_81 = arith.constant 23 : index
    %c0_82 = arith.constant 0 : index
    %121 = vector.load %arg6[%c0_80, %c23_81, %c0_82] : memref<1x28x128xf32, #tpu.memory_space<vmem>>, vector<1x2x128xf32>
    %122 = vector.shape_cast %121 : vector<1x2x128xf32> to vector<2x128xf32>
    %123 = vector.shape_cast %120 : vector<2x128xf32> to vector<1x2x128xf32>
    tpu.vector_store %arg6[%c0_80, %c23_81, %c0_82], %123 {strides = array<i32>} : memref<1x28x128xf32, #tpu.memory_space<vmem>>, vector<1x2x128xf32>,
    %c0_83 = arith.constant 0 : index
    %c27 = arith.constant 27 : index
    %c0_84 = arith.constant 0 : index
    %124 = vector.load %arg6[%c0_83, %c27, %c0_84] : memref<1x28x128xf32, #tpu.memory_space<vmem>>, vector<1x1x128xf32>
    %125 = vector.shape_cast %124 : vector<1x1x128xf32> to vector<1x128xf32>
    %cst_85 = arith.constant 0.000000e+00 : f32
    %126 = vector.broadcast %cst_85 : f32 to vector<1x128xf32>
    %127 = arith.maximumf %125, %126 : vector<1x128xf32>
    %128 = math.absf %125 : vector<1x128xf32>
    %cst_86 = arith.constant 0.000000e+00 : f32
    %129 = vector.broadcast %cst_86 : f32 to vector<1x128xf32>
    %130 = arith.subf %129, %128 : vector<1x128xf32>
    %131 = math.exp %130 : vector<1x128xf32>
    %cst_87 = arith.constant 1.000000e+00 : f32
    %132 = vector.broadcast %cst_87 : f32 to vector<1x128xf32>
    %133 = arith.addf %132, %131 : vector<1x128xf32>
    %134 = math.log %133 : vector<1x128xf32>
    %135 = arith.addf %127, %134 : vector<1x128xf32>
    %c0_88 = arith.constant 0 : index
    %c27_89 = arith.constant 27 : index
    %c0_90 = arith.constant 0 : index
    %136 = vector.load %arg6[%c0_88, %c27_89, %c0_90] : memref<1x28x128xf32, #tpu.memory_space<vmem>>, vector<1x1x128xf32>
    %137 = vector.shape_cast %136 : vector<1x1x128xf32> to vector<1x128xf32>
    %138 = vector.shape_cast %135 : vector<1x128xf32> to vector<1x1x128xf32>
    tpu.vector_store %arg6[%c0_88, %c27_89, %c0_90], %138 {strides = array<i32>} : memref<1x28x128xf32, #tpu.memory_space<vmem>>, vector<1x1x128xf32>,
    return
  }
  func.func @transform_0(%arg0: i32, %arg1: i32) -> (i32, i32, i32) {
    %c0_i32 = arith.constant 0 : i32
    %c0_i32_0 = arith.constant 0 : i32
    return %arg0, %c0_i32, %arg1 : i32, i32, i32
  }
  func.func @transform_1(%arg0: i32, %arg1: i32) -> (i32, i32) {
    %c0_i32 = arith.constant 0 : i32
    %c0_i32_0 = arith.constant 0 : i32
    %c0_i32_1 = arith.constant 0 : i32
    return %c0_i32, %c0_i32_0 : i32, i32
  }
  func.func @transform_2(%arg0: i32, %arg1: i32) -> (i32, i32) {
    %c0_i32 = arith.constant 0 : i32
    %c0_i32_0 = arith.constant 0 : i32
    %c0_i32_1 = arith.constant 0 : i32
    return %c0_i32, %c0_i32_0 : i32, i32
  }
  func.func @transform_3(%arg0: i32, %arg1: i32) -> (i32, i32) {
    %c0_i32 = arith.constant 0 : i32
    %c0_i32_0 = arith.constant 0 : i32
    return %c0_i32, %arg1 : i32, i32
  }
  func.func @transform_4(%arg0: i32, %arg1: i32) -> (i32, i32, i32) {
    %c0_i32 = arith.constant 0 : i32
    %c0_i32_0 = arith.constant 0 : i32
    return %arg0, %c0_i32, %arg1 : i32, i32, i32
  }
}

</mosaic_0001>

<llo_original>
// kernel: tpu_custom_call.1
$region0: #{tpu_custom_call.1}
  #allocation0 [shape = 'u32[]', space=smem, size = 0x4, offset = 0x4, fixed_abs, tag = 'smem constant byte address 0x4 - core index']
  #allocation1 [shape = 'u32[72,128]{1,0:T(1,128)}', space=vmem, size = 0x9000, scoped, tag = 'internal scratch']
  %s0 = inlined_call_operand.hbm [shape: f32[2,32,256], index: 0, kind: input, shape index: {}]
  %s1 = inlined_call_operand.vmem [shape: f32[28,32], index: 1, kind: input, shape index: {}]
  %s2 = inlined_call_operand.vmem [shape: f32[28,1], index: 2, kind: input, shape index: {}]
  %s3 = inlined_call_operand.hbm [shape: f32[2,256], index: 3, kind: input, shape index: {}]
  %s4 = inlined_call_operand.vmem [shape: f32[2,28,256], index: 4, kind: output, shape index: {}]
  %s5 = sld [smem:[#allocation0]]
  $region91: #{tpu_custom_call.1} parent=0
    _
  %s7 = ssub.s32 1, %s5
  %s8 = scalar_select 0, %s7, %s5
  $region1: #{tpu_custom_call.1} parent=0
    #allocation2 [shape = 'u8[32768]{0}', space=vmem, size = 0x8000, scoped, tag = 'input window, operand 0']
    #allocation3 [shape = 's32[2]{0}', space=sflag, size = 0x8, scoped, tag = 'scoped memory for tpu_custom_call.1']
    #allocation4 [shape = 'u8[2048]{0}', space=vmem, size = 0x800, scoped, tag = 'input window, operand 3']
    #allocation5 [shape = 's32[2]{0}', space=sflag, size = 0x8, scoped, tag = 'scoped memory for tpu_custom_call.1']
    #allocation6 [shape = 'u8[32768]{0}', space=vmem, size = 0x8000, scoped, tag = 'output window, operand 0']
    %9 = vsyncpa [#allocation3], 0
    %s10 = scalar_lea.sflag [#allocation3], 1
    %11 = vsyncpa %s10, 0
    %12 = vsyncpa [#allocation5], 0
    %s13 = scalar_lea.sflag [#allocation5], 1
    %14 = vsyncpa %s13, 0
    loop: start=0, step=1, limit=6
    $region2: #{tpu_custom_call.1} parent=1 // loop_pre_header
      _
    $region3: #{tpu_custom_call.1} parent=1 // loop_header
      %s16 = sphi 0, %s20
      %p17 = scmp.ge.s32.totalorder %s16, 6
      %s23 = sphi 0, %s35
      %s24 = sphi 0, %s31
      %s25 = sphi 0, %s23
      %s26 = sphi 0, %s24
      %s27 = sphi 0, %s25
      %s28 = sphi 0, %s26
      %s40 = sphi 0, %s42
      %s43 = sphi 0, %s40
      %s44 = sphi 0, %s43
      %s60 = sphi 0, %s44
      %s64 = sphi 0, %s64
      %s66 = sphi 0, %s64
      %s67 = sphi 0, %s66
      %s81 = sphi 0, %s67
      %s85 = sphi 0, %s85
      %s87 = sphi 0, %s85
      %s88 = sphi 0, %s87
      %s102 = sphi 0, %s88
      %s108 = sphi 0, %s110
      %s111 = sphi 0, %s108
      %s112 = sphi 0, %s111
      %s128 = sphi 0, %s112
      %s136 = sphi 0, %s138
      %s139 = sphi 0, %s136
      %s140 = sphi 0, %s139
      %s156 = sphi 0, %s140
    $region4: #{tpu_custom_call.1} parent=1 // loop_header_branch
      %19 = sbr.rel (%p17) target = $region8
    $region5: #{tpu_custom_call.1} parent=1 // loop_body
      %s21 = ssub.s32 %s16, 1
      %s22 = ssub.s32 %s16, 2
      %s29 = sadd.s32 1, %s24
      %p30 = scmp.ge.s32.totalorder %s29, 2
      %s31 = scalar_select %p30, 0, %s29
      %s32 = sadd.s32 1, %s23
      %s33 = scalar_select %p30, %s32, %s23
      %p34 = scmp.ge.s32.totalorder %s33, 2
      %s35 = scalar_select %p34, 0, %s33
      %s36 = ssub.s32 %s23, %s35
      %s37 = ssub.s32 %s24, %s31
      %s38 = sor.u32 %s36, %s37
      %p39 = scmp.eq.s32.totalorder %s38, 0
      %s41 = sadd.s32 %s40, 1
      %s42 = scalar_select %p39, %s40, %s41
      %p45 = pneg %p39
      %p46 = scmp.eq.s32.totalorder %s16, 3
      %p47 = por %p45, %p46
      %p48 = scmp.ne.s32.totalorder %s40, %s43
      %p49 = scmp.eq.s32.totalorder %s16, 0
      %p50 = por %p48, %p49
      %p51 = scmp.ne.s32.totalorder %s40, %s43
      %p52 = scmp.eq.s32.totalorder %s21, 3
      %p53 = por %p51, %p52
      %p54 = scmp.ne.s32.totalorder %s43, %s44
      %p55 = scmp.eq.s32.totalorder %s21, 0
      %p56 = por %p54, %p55
      %p57 = scmp.ne.s32.totalorder %s43, %s44
      %p58 = scmp.eq.s32.totalorder %s22, 3
      %p59 = por %p57, %p58
      %p61 = scmp.ne.s32.totalorder %s44, %s60
      %p62 = scmp.eq.s32.totalorder %s22, 0
      %p63 = por %p61, %p62
      %s65 = sadd.s32 %s64, 1
      %p68 = scmp.eq.s32.totalorder %s16, 3
      %p69 = scmp.ne.s32.totalorder %s64, %s66
      %p70 = scmp.eq.s32.totalorder %s16, 0
      %p71 = por %p69, %p70
      %p72 = scmp.ne.s32.totalorder %s64, %s66
      %p73 = scmp.eq.s32.totalorder %s21, 3
      %p74 = por %p72, %p73
      %p75 = scmp.ne.s32.totalorder %s66, %s67
      %p76 = scmp.eq.s32.totalorder %s21, 0
      %p77 = por %p75, %p76
      %p78 = scmp.ne.s32.totalorder %s66, %s67
      %p79 = scmp.eq.s32.totalorder %s22, 3
      %p80 = por %p78, %p79
      %p82 = scmp.ne.s32.totalorder %s67, %s81
      %p83 = scmp.eq.s32.totalorder %s22, 0
      %p84 = por %p82, %p83
      %s86 = sadd.s32 %s85, 1
      %p89 = scmp.eq.s32.totalorder %s16, 3
      %p90 = scmp.ne.s32.totalorder %s85, %s87
      %p91 = scmp.eq.s32.totalorder %s16, 0
      %p92 = por %p90, %p91
      %p93 = scmp.ne.s32.totalorder %s85, %s87
      %p94 = scmp.eq.s32.totalorder %s21, 3
      %p95 = por %p93, %p94
      %p96 = scmp.ne.s32.totalorder %s87, %s88
      %p97 = scmp.eq.s32.totalorder %s21, 0
      %p98 = por %p96, %p97
      %p99 = scmp.ne.s32.totalorder %s87, %s88
      %p100 = scmp.eq.s32.totalorder %s22, 3
      %p101 = por %p99, %p100
      %p103 = scmp.ne.s32.totalorder %s88, %s102
      %p104 = scmp.eq.s32.totalorder %s22, 0
      %p105 = por %p103, %p104
      %s106 = ssub.s32 %s24, %s31
      %p107 = scmp.eq.s32.totalorder %s106, 0
      %s109 = sadd.s32 %s108, 1
      %s110 = scalar_select %p107, %s108, %s109
      %p113 = pneg %p107
      %p114 = scmp.eq.s32.totalorder %s16, 3
      %p115 = por %p113, %p114
      %p116 = scmp.ne.s32.totalorder %s108, %s111
      %p117 = scmp.eq.s32.totalorder %s16, 0
      %p118 = por %p116, %p117
      %p119 = scmp.ne.s32.totalorder %s108, %s111
      %p120 = scmp.eq.s32.totalorder %s21, 3
      %p121 = por %p119, %p120
      %p122 = scmp.ne.s32.totalorder %s111, %s112
      %p123 = scmp.eq.s32.totalorder %s21, 0
      %p124 = por %p122, %p123
      %p125 = scmp.ne.s32.totalorder %s111, %s112
      %p126 = scmp.eq.s32.totalorder %s22, 3
      %p127 = por %p125, %p126
      %p129 = scmp.ne.s32.totalorder %s112, %s128
      %p130 = scmp.eq.s32.totalorder %s22, 0
      %p131 = por %p129, %p130
      %s132 = ssub.s32 %s23, %s35
      %s133 = ssub.s32 %s24, %s31
      %s134 = sor.u32 %s132, %s133
      %p135 = scmp.eq.s32.totalorder %s134, 0
      %s137 = sadd.s32 %s136, 1
      %s138 = scalar_select %p135, %s136, %s137
      %p141 = pneg %p135
      %p142 = scmp.eq.s32.totalorder %s16, 3
      %p143 = por %p141, %p142
      %p144 = scmp.ne.s32.totalorder %s136, %s139
      %p145 = scmp.eq.s32.totalorder %s16, 0
      %p146 = por %p144, %p145
      %p147 = scmp.ne.s32.totalorder %s136, %s139
      %p148 = scmp.eq.s32.totalorder %s21, 3
      %p149 = por %p147, %p148
      %p150 = scmp.ne.s32.totalorder %s139, %s140
      %p151 = scmp.eq.s32.totalorder %s21, 0
      %p152 = por %p150, %p151
      %p153 = scmp.ne.s32.totalorder %s139, %s140
      %p154 = scmp.eq.s32.totalorder %s22, 3
      %p155 = por %p153, %p154
      %p157 = scmp.ne.s32.totalorder %s140, %s156
      %p158 = scmp.eq.s32.totalorder %s22, 0
      %p159 = por %p157, %p158
      %p160 = scmp.le.s32.totalorder 1, %s16
      %p161 = scmp.lt.s32.totalorder %s16, 5
      %p162 = pnand %p160, %p161
      %p163 = pneg %p162
      // Predicated region
      $region9: #{tpu_custom_call.1} parent=5 // pred_check
        _
      $region10: #{tpu_custom_call.1} parent=5 // pred_check_branch
        %165 = sbr.rel (%p162) target = $region12
      $region11: #{tpu_custom_call.1} parent=5 // pred_region
        %s166 = ssub.s32 %s16, 1
        // Predicated region
        $region13: #{tpu_custom_call.1} parent=11 // pred_check
          %p167 = pneg %p77
        $region14: #{tpu_custom_call.1} parent=11 // pred_check_branch
          %169 = sbr.rel (%p167) target = $region16
        $region15: #{tpu_custom_call.1} parent=11 // pred_region
          _
        $region16: #{tpu_custom_call.1} parent=11 // pred_fallthru
          _
        // Predicated region
        $region17: #{tpu_custom_call.1} parent=11 // pred_check
          %p170 = pneg %p98
        $region18: #{tpu_custom_call.1} parent=11 // pred_check_branch
          %172 = sbr.rel (%p170) target = $region20
        $region19: #{tpu_custom_call.1} parent=11 // pred_region
          _
        $region20: #{tpu_custom_call.1} parent=11 // pred_fallthru
          _
      $region12: #{tpu_custom_call.1} parent=5 // pred_fallthru
        _
      %p173 = scmp.lt.s32.totalorder %s16, 4
      // Predicated region
      $region21: #{tpu_custom_call.1} parent=5 // pred_check
        %p174 = pneg %p173
      $region22: #{tpu_custom_call.1} parent=5 // pred_check_branch
        %176 = sbr.rel (%p174) target = $region24
      $region23: #{tpu_custom_call.1} parent=5 // pred_region
        // Predicated region
        $region25: #{tpu_custom_call.1} parent=23 // pred_check
          %p177 = pneg %p50
        $region26: #{tpu_custom_call.1} parent=23 // pred_check_branch
          %179 = sbr.rel (%p177) target = $region28
        $region27: #{tpu_custom_call.1} parent=23 // pred_region
          %s180 = sand.u32 %s40, 1
          %s181 = scalar_lea.sflag [#allocation3], %s180
          %s182 = sand.u32 %s40, 1
          %s183 = smul.addr %s182, 32
          %s184 = scalar_lea.vmem [#allocation2], %s183
          %186 = vsyncadd %s181, 0
          %s187 = smul.addr %s23, 8
          %s188 = sadd.s32 %s24, %s187
          %s189 = smul.addr %s188, 8
          %s190 = scalar_lea.hbm %s0, %s189
          %s191 = sshll.u32 %s190, 4
          %s192 = int_to_ptr.hbm [resolvable:$true] %s191
          %s193 = sshll.u32 %s184, 4
          %s194 = int_to_ptr.vmem [resolvable:$true] %s193
          %199 = dma.hbm_to_vmem [thread:$0]  %s192, 512, %s194, %s181, 256, 128, 8
        $region28: #{tpu_custom_call.1} parent=23 // pred_fallthru
          _
        // Predicated region
        $region29: #{tpu_custom_call.1} parent=23 // pred_check
          %p200 = pneg %p118
        $region30: #{tpu_custom_call.1} parent=23 // pred_check_branch
          %202 = sbr.rel (%p200) target = $region32
        $region31: #{tpu_custom_call.1} parent=23 // pred_region
          %s203 = sand.u32 %s108, 1
          %s204 = scalar_lea.sflag [#allocation5], %s203
          %s205 = sand.u32 %s108, 1
          %s206 = smul.addr %s205, 2
          %s207 = scalar_lea.vmem [#allocation4], %s206
          %209 = vsyncadd %s204, 0
          %s210 = smul.addr %s24, 2
          %s211 = scalar_lea.hbm %s3, %s210
          %s213 = sshll.u32 %s211, 4
          %s214 = int_to_ptr.hbm [resolvable:$true] %s213
          %s215 = sshll.u32 %s207, 4
          %s216 = int_to_ptr.vmem [resolvable:$true] %s215
          %218 = dma.hbm_to_vmem [thread:$0]  %s214, 32, %s216, %s204
        $region32: #{tpu_custom_call.1} parent=23 // pred_fallthru
          _
      $region24: #{tpu_custom_call.1} parent=5 // pred_fallthru
        _
      %p219 = scmp.le.s32.totalorder 1, %s16
      %p220 = scmp.lt.s32.totalorder %s16, 5
      %p221 = pnand %p219, %p220
      %p222 = pneg %p221
      // Predicated region
      $region33: #{tpu_custom_call.1} parent=5 // pred_check
        _
      $region34: #{tpu_custom_call.1} parent=5 // pred_check_branch
        %224 = sbr.rel (%p221) target = $region36
      $region35: #{tpu_custom_call.1} parent=5 // pred_region
        %s225 = ssub.s32 %s16, 1
        %s226 = sand.u32 %s43, 1
        %s227 = scalar_lea.sflag [#allocation3], %s226
        %s228 = sand.u32 %s43, 1
        %s229 = smul.addr %s228, 32
        %s230 = scalar_lea.vmem [#allocation2], %s229
        // Predicated region
        $region37: #{tpu_custom_call.1} parent=35 // pred_check
          %p231 = pneg %p56
        $region38: #{tpu_custom_call.1} parent=35 // pred_check_branch
          %233 = sbr.rel (%p231) target = $region40
        $region39: #{tpu_custom_call.1} parent=35 // pred_region
          %235 = dma.done %s227, 512
        $region40: #{tpu_custom_call.1} parent=35 // pred_fallthru
          _
        %s236 = sand.u32 %s111, 1
        %s237 = scalar_lea.sflag [#allocation5], %s236
        %s238 = sand.u32 %s111, 1
        %s239 = smul.addr %s238, 2
        %s240 = scalar_lea.vmem [#allocation4], %s239
        // Predicated region
        $region41: #{tpu_custom_call.1} parent=35 // pred_check
          %p241 = pneg %p124
        $region42: #{tpu_custom_call.1} parent=35 // pred_check_branch
          %243 = sbr.rel (%p241) target = $region44
        $region43: #{tpu_custom_call.1} parent=35 // pred_region
          %245 = dma.done %s237, 32
        $region44: #{tpu_custom_call.1} parent=35 // pred_fallthru
          _
        %s246 = sand.u32 %s43, 1
        %s247 = scalar_lea.sflag [#allocation3], %s246
        %s248 = sand.u32 %s43, 1
        %s249 = smul.addr %s248, 32
        %s250 = scalar_lea.vmem [#allocation2], %s249
        %p251 = pneg %p56
        %p252 = pneg %p53
        %p253 = pneg %p77
        %p254 = pneg %p74
        %p255 = pneg %p98
        %p256 = pneg %p95
        %s257 = sand.u32 %s111, 1
        %s258 = scalar_lea.sflag [#allocation5], %s257
        %s259 = sand.u32 %s111, 1
        %s260 = smul.addr %s259, 2
        %s261 = scalar_lea.vmem [#allocation4], %s260
        %p262 = pneg %p124
        %p263 = pneg %p121
        %p264 = pneg %p152
        %p265 = pneg %p149
        %s266 = sand.u32 %s139, 1
        %s267 = sand.u32 %s139, 1
        %s268 = smul.addr %s267, 32
        %s269 = scalar_lea.vmem [#allocation6], %s268
        %v270 = vld [vmem:[%s230] sm:$0xff]
        %v271 = vld [vmem:[%s230 + $0x8] sm:$0xff]
        %v272 = vld [vmem:[%s230 + $0x10] sm:$0xff]
        %v273 = vld [vmem:[%s230 + $0x18] sm:$0xff]
        %v274 = vld [vmem:[%s1] sm:$0xff]
        %v275 = vld [vmem:[%s1 + $0x8] sm:$0xff]
        %v276 = vld [vmem:[%s1 + $0x10] sm:$0xff]
        %v277 = vld [vmem:[%s1 + $0x18] sm:$0xf]
        %v278 = vld [vmem:[%s2] sm:$0xff]
        %v279 = vld [vmem:[%s2 + $0x8] sm:$0xff]
        %v280 = vld [vmem:[%s2 + $0x10] sm:$0xff]
        %v281 = vld [vmem:[%s2 + $0x18] sm:$0xf]
        %283 = vset.pattern.permute.xlu0 0
        %284 = vperm.xlu0 %283, %v278
        %v285 = vpop.permute.xlu0 %284
        %288 = vset.pattern.permute.xlu0 0
        %289 = vperm.xlu0 %288, %v279
        %v290 = vpop.permute.xlu0 %289
        %293 = vset.pattern.permute.xlu0 0
        %294 = vperm.xlu0 %293, %v280
        %v295 = vpop.permute.xlu0 %294
        %298 = vset.pattern.permute.xlu0 0
        %299 = vperm.xlu0 %298, %v281
        %v300 = vpop.permute.xlu0 %299
        %vm302 = vcmask 261120
        %v304 = vsel %vm302, %v274, 0
        %v307 = vsel %vm302, %v275, 0
        %v310 = vsel %vm302, %v276, 0
        %v313 = vsel %vm302, %v277, 0
        %315 = vmatpush.msra.mxu0 0.0
        %316 = vmatpush.msra.mxu0 0.0
        %317 = vmatpush.msra.mxu0 0.0
        %318 = vmatpush.msra.mxu0 0.0
        %319 = vmatpush.msra.mxu0 0.0
        %320 = vmatpush.msra.mxu0 0.0
        %321 = vmatpush.msra.mxu0 0.0
        %322 = vmatpush.msra.mxu0 0.0
        %323 = vmatpush.msra.mxu0 0.0
        %324 = vmatpush.msra.mxu0 0.0
        %325 = vmatpush.msra.mxu0 0.0
        %326 = vmatpush.msra.mxu0 0.0
        %327 = vmatpush.msra.mxu0 %v273
        %328 = vmatpush.msra.mxu0 %v272
        %329 = vmatpush.msra.mxu0 %v271
        %330 = vmatpush.msra.mxu0 %v270
        %331 = vmatmul.f32.gmra.mxu0 %v304
        %v332 = vpop.f32.mrf.mxu0
        %v333 = vadd.f32 %v285, %v332
        %334 = vmatmul.f32.gmra.mxu0 %v307
        %v335 = vpop.f32.mrf.mxu0
        %v336 = vadd.f32 %v290, %v335
        %337 = vmatmul.f32.gmra.mxu0 %v310
        %v338 = vpop.f32.mrf.mxu0
        %v339 = vadd.f32 %v295, %v338
        %340 = vmatmul.f32.gmra.mxu0 %v313
        %v341 = vpop.f32.mrf.mxu0
        %v342 = vadd.f32 %v300, %v341
        %343 = vdwg.mxu0
        %344 = vst [vmem:[%s269] sm:$0xff] %v333
        %345 = vst [vmem:[%s269 + $0x8] sm:$0xff] %v336
        %346 = vst [vmem:[%s269 + $0x10] sm:$0xff] %v339
        %347 = vst [vmem:[%s269 + $0x18] sm:$0xf] %v342
        %v348 = vld [vmem:[%s240] sm:$0x3]
        %v349 = vld [vmem:[%s269 + $0x1] sm:$0x1]
        %v350 = vsub.f32 0.0, %v349
        %v351 = vmul.f32 %v350, 1.442695
        %v352 = vpow.pop %v351
        %v353 = vadd.f32 %v352, 1.0
        %v354 = vrcp.pop %v353
        %355 = vst [vmem:[%s269 + $0x1] sm:$0x1] %v354
        %v356 = vld [vmem:[%s269 + $0x2] sm:$0x3]
        %v357 = vadd.f32 %v356, %v348
        %358 = vst [vmem:[%s269 + $0x2] sm:$0x3] %v357
        %v359 = vld [vmem:[%s269 + $0x6] sm:$0x1]
        %v360 = vmax.f32 %v359, 0.0
        %v361 = vand.u32 2147483647, %v359
        %v362 = vsub.f32 0.0, %v361
        %v363 = vmul.f32 %v362, 1.442695
        %v364 = vpow.pop %v363
        %v365 = vadd.f32 %v364, 1.0
        %v366 = vlog2.pop %v365
        %v367 = vmul.f32 %v366, 0.6931472
        %v368 = vadd.f32 %v360, %v367
        %369 = vst [vmem:[%s269 + $0x6] sm:$0x1] %v368
        %v370 = vld [vmem:[%s269 + $0x8] sm:$0x1]
        %v371 = vsub.f32 0.0, %v370
        %v372 = vmul.f32 %v371, 1.442695
        %v373 = vpow.pop %v372
        %v374 = vadd.f32 %v373, 1.0
        %v375 = vrcp.pop %v374
        %376 = vst [vmem:[%s269 + $0x8] sm:$0x1] %v375
        %v377 = vld [vmem:[%s269 + $0x9] sm:$0x3]
        %v378 = vadd.f32 %v377, %v348
        %379 = vst [vmem:[%s269 + $0x9] sm:$0x3] %v378
        %v380 = vld [vmem:[%s269 + $0xd] sm:$0x1]
        %v381 = vmax.f32 %v380, 0.0
        %v382 = vand.u32 2147483647, %v380
        %v383 = vsub.f32 0.0, %v382
        %v384 = vmul.f32 %v383, 1.442695
        %v385 = vpow.pop %v384
        %v386 = vadd.f32 %v385, 1.0
        %v387 = vlog2.pop %v386
        %v388 = vmul.f32 %v387, 0.6931472
        %v389 = vadd.f32 %v381, %v388
        %390 = vst [vmem:[%s269 + $0xd] sm:$0x1] %v389
        %v391 = vld [vmem:[%s269 + $0xf] sm:$0x1]
        %v392 = vsub.f32 0.0, %v391
        %v393 = vmul.f32 %v392, 1.442695
        %v394 = vpow.pop %v393
        %v395 = vadd.f32 %v394, 1.0
        %v396 = vrcp.pop %v395
        %397 = vst [vmem:[%s269 + $0xf] sm:$0x1] %v396
        %v398 = vld [vmem:[%s269 + $0x10] sm:$0x3]
        %v399 = vadd.f32 %v398, %v348
        %400 = vst [vmem:[%s269 + $0x10] sm:$0x3] %v399
        %v401 = vld [vmem:[%s269 + $0x14] sm:$0x1]
        %v402 = vmax.f32 %v401, 0.0
        %v403 = vand.u32 2147483647, %v401
        %v404 = vsub.f32 0.0, %v403
        %v405 = vmul.f32 %v404, 1.442695
        %v406 = vpow.pop %v405
        %v407 = vadd.f32 %v406, 1.0
        %v408 = vlog2.pop %v407
        %v409 = vmul.f32 %v408, 0.6931472
        %v410 = vadd.f32 %v402, %v409
        %411 = vst [vmem:[%s269 + $0x14] sm:$0x1] %v410
        %v412 = vld [vmem:[%s269 + $0x16] sm:$0x1]
        %v413 = vsub.f32 0.0, %v412
        %v414 = vmul.f32 %v413, 1.442695
        %v415 = vpow.pop %v414
        %v416 = vadd.f32 %v415, 1.0
        %v417 = vrcp.pop %v416
        %418 = vst [vmem:[%s269 + $0x16] sm:$0x1] %v417
        %v419 = vld [vmem:[%s269 + $0x17] sm:$0x3]
        %v420 = vadd.f32 %v419, %v348
        %421 = vst [vmem:[%s269 + $0x17] sm:$0x3] %v420
        %v422 = vld [vmem:[%s269 + $0x1b] sm:$0x1]
        %v423 = vmax.f32 %v422, 0.0
        %v424 = vand.u32 2147483647, %v422
        %v425 = vsub.f32 0.0, %v424
        %v426 = vmul.f32 %v425, 1.442695
        %v427 = vpow.pop %v426
        %v428 = vadd.f32 %v427, 1.0
        %v429 = vlog2.pop %v428
        %v430 = vmul.f32 %v429, 0.6931472
        %v431 = vadd.f32 %v423, %v430
        %432 = vst [vmem:[%s269 + $0x1b] sm:$0x1] %v431
        %s433 = sand.u32 %s139, 1
        %s434 = sand.u32 %s139, 1
        %s435 = smul.addr %s434, 32
        %s436 = scalar_lea.vmem [#allocation6], %s435
        // Predicated region
        $region45: #{tpu_custom_call.1} parent=35 // pred_check
          %p437 = pneg %p149
        $region46: #{tpu_custom_call.1} parent=35 // pred_check_branch
          %439 = sbr.rel (%p437) target = $region48
        $region47: #{tpu_custom_call.1} parent=35 // pred_region
          %s440 = smul.addr %s25, 8
          %s441 = sadd.s32 %s26, %s440
          %s442 = smul.addr %s441, 8
          %s443 = scalar_lea.vmem %s4, %s442
          // Predicated region
          $region49: #{tpu_custom_call.1} parent=47 // pred_check
            _
          $region50: #{tpu_custom_call.1} parent=47 // pred_check_branch
            %445 = sbr.rel (0) target = $region52
          $region51: #{tpu_custom_call.1} parent=47 // pred_region
            // Predicated region
            $region53: #{tpu_custom_call.1} parent=51 // pred_check
              _
            $region54: #{tpu_custom_call.1} parent=51 // pred_check_branch
              %447 = sbr.rel (0) target = $region56
            $region55: #{tpu_custom_call.1} parent=51 // pred_region
              // Predicated region
              $region68: #{tpu_custom_call.1} parent=55 // pred_check
                _
              $region69: #{tpu_custom_call.1} parent=55 // pred_check_branch
                %469 = sbr.rel (0) target = $region71
              $region70: #{tpu_custom_call.1} parent=55 // pred_region
                loop: start=0, step=1, limit=1
                $region72: #{tpu_custom_call.1} parent=70 // loop_pre_header
                  _
                $region73: #{tpu_custom_call.1} parent=70 // loop_header
                  %s471 = sphi 0, %s475
                  %p472 = scmp.ge.s32.totalorder %s471, 1
                  %s476 = sphi %s436, %s436
                  %s477 = sphi %s443, %s443
                $region74: #{tpu_custom_call.1} parent=70 // loop_header_branch
                  %474 = sbr.rel (%p472) target = $region78
                $region75: #{tpu_custom_call.1} parent=70 // loop_body
                  %v478 = vld [vmem:[%s476] sm:$0xff]
                  %479 = vst [vmem:[%s477] sm:$0xff] %v478
                  %v480 = vld [vmem:[%s476 + $0x8] sm:$0xff]
                  %481 = vst [vmem:[%s477 + $0x10] sm:$0xff] %v480
                  %v482 = vld [vmem:[%s476 + $0x10] sm:$0xff]
                  %483 = vst [vmem:[%s477 + $0x20] sm:$0xff] %v482
                  %v484 = vld [vmem:[%s476 + $0x18] sm:$0xff]
                  %485 = vst [vmem:[%s477 + $0x30] sm:$0xff] %v484
                $region76: #{tpu_custom_call.1} parent=70 // loop_footer
                  %s475 = sadd.s32 1, %s471
                $region77: #{tpu_custom_call.1} parent=70 // loop_footer_branch
                  %470 = sbr.rel target = $region73
                $region78: #{tpu_custom_call.1} parent=70 // loop_exit
                  _
              $region71: #{tpu_custom_call.1} parent=55 // pred_fallthru
                _
              // Predicated region
              $region79: #{tpu_custom_call.1} parent=55 // pred_check
                _
              $region80: #{tpu_custom_call.1} parent=55 // pred_check_branch
                %487 = sbr.rel target = $region82
              $region81: #{tpu_custom_call.1} parent=55 // pred_region
                _
              $region82: #{tpu_custom_call.1} parent=55 // pred_fallthru
                _
            $region56: #{tpu_custom_call.1} parent=51 // pred_fallthru
              _
            // Predicated region
            $region57: #{tpu_custom_call.1} parent=51 // pred_check
              _
            $region58: #{tpu_custom_call.1} parent=51 // pred_check_branch
              %449 = sbr.rel target = $region60
            $region59: #{tpu_custom_call.1} parent=51 // pred_region
              %s451 = ssub.s32 256, 1
              loop: start=0, step=1, limit=1
              $region61: #{tpu_custom_call.1} parent=59 // loop_pre_header
                _
              $region62: #{tpu_custom_call.1} parent=59 // loop_header
                %s453 = sphi 0, %s457
                %p454 = scmp.ge.s32.totalorder %s453, 1
                %s458 = sphi %s436, %s436
                %s459 = sphi %s443, %s443
              $region63: #{tpu_custom_call.1} parent=59 // loop_header_branch
                %456 = sbr.rel (%p454) target = $region67
              $region64: #{tpu_custom_call.1} parent=59 // loop_body
                %v460 = vld [vmem:[%s458] sm:%s451]
                %461 = vst [vmem:[%s459] sm:%s451] %v460
                %v462 = vld [vmem:[%s458 + $0x8] sm:%s451]
                %463 = vst [vmem:[%s459 + $0x10] sm:%s451] %v462
                %v464 = vld [vmem:[%s458 + $0x10] sm:%s451]
                %465 = vst [vmem:[%s459 + $0x20] sm:%s451] %v464
                %v466 = vld [vmem:[%s458 + $0x18] sm:%s451]
                %467 = vst [vmem:[%s459 + $0x30] sm:%s451] %v466
              $region65: #{tpu_custom_call.1} parent=59 // loop_footer
                %s457 = sadd.s32 1, %s453
              $region66: #{tpu_custom_call.1} parent=59 // loop_footer_branch
                %452 = sbr.rel target = $region62
              $region67: #{tpu_custom_call.1} parent=59 // loop_exit
                _
            $region60: #{tpu_custom_call.1} parent=51 // pred_fallthru
              _
          $region52: #{tpu_custom_call.1} parent=47 // pred_fallthru
            _
          %488 = vnop
        $region48: #{tpu_custom_call.1} parent=35 // pred_fallthru
          _
      $region36: #{tpu_custom_call.1} parent=5 // pred_fallthru
        _
      %p489 = scmp.le.s32.totalorder 2, %s16
      // Predicated region
      $region83: #{tpu_custom_call.1} parent=5 // pred_check
        %p490 = pneg %p489
      $region84: #{tpu_custom_call.1} parent=5 // pred_check_branch
        %492 = sbr.rel (%p490) target = $region86
      $region85: #{tpu_custom_call.1} parent=5 // pred_region
        %s493 = ssub.s32 %s16, 2
        // Predicated region
        $region87: #{tpu_custom_call.1} parent=85 // pred_check
          %p494 = pneg %p155
        $region88: #{tpu_custom_call.1} parent=85 // pred_check_branch
          %496 = sbr.rel (%p494) target = $region90
        $region89: #{tpu_custom_call.1} parent=85 // pred_region
          %s497 = sand.u32 %s140, 1
          %s498 = sand.u32 %s140, 1
          %s499 = smul.addr %s498, 32
          %s500 = scalar_lea.vmem [#allocation6], %s499
        $region90: #{tpu_custom_call.1} parent=85 // pred_fallthru
          _
      $region86: #{tpu_custom_call.1} parent=5 // pred_fallthru
        _
    $region6: #{tpu_custom_call.1} parent=1 // loop_footer
      %s20 = sadd.s32 1, %s16
    $region7: #{tpu_custom_call.1} parent=1 // loop_footer_branch
      %15 = sbr.rel target = $region3
    $region8: #{tpu_custom_call.1} parent=1 // loop_exit
      _
    %501 = vsyncpa [#allocation3], 1
    %s502 = scalar_lea.sflag [#allocation3], 1
    %503 = vsyncpa %s502, 1
    %504 = vsyncpa [#allocation5], 1
    %s505 = scalar_lea.sflag [#allocation5], 1
    %506 = vsyncpa %s505, 1

// kernel: tpu_custom_call.1
$region0: #{tpu_custom_call.1}
  #allocation0 [shape = 'u32[]', space=smem, size = 0x4, offset = 0x4, fixed_abs, tag = 'smem constant byte address 0x4 - core index']
  #allocation1 [shape = 'u32[72,128]{1,0:T(1,128)}', space=vmem, size = 0x9000, scoped, tag = 'internal scratch']
  %s0 = inlined_call_operand.hbm [shape: f32[2,32,256], index: 0, kind: input, shape index: {}]
  %s1 = inlined_call_operand.vmem [shape: f32[28,32], index: 1, kind: input, shape index: {}]
  %s2 = inlined_call_operand.vmem [shape: f32[28,1], index: 2, kind: input, shape index: {}]
  %s3 = inlined_call_operand.hbm [shape: f32[2,256], index: 3, kind: input, shape index: {}]
  %s4 = inlined_call_operand.vmem [shape: f32[2,28,256], index: 4, kind: output, shape index: {}]
  %s5 = sld [smem:[#allocation0]]
  $region91: #{tpu_custom_call.1} parent=0
    _
  %s7 = ssub.s32 1, %s5
  %s8 = scalar_select 0, %s7, %s5
  $region1: #{tpu_custom_call.1} parent=0
    #allocation2 [shape = 'u8[32768]{0}', space=vmem, size = 0x8000, scoped, tag = 'input window, operand 0']
    #allocation3 [shape = 's32[2]{0}', space=sflag, size = 0x8, scoped, tag = 'scoped memory for tpu_custom_call.1']
    #allocation4 [shape = 'u8[2048]{0}', space=vmem, size = 0x800, scoped, tag = 'input window, operand 3']
    #allocation5 [shape = 's32[2]{0}', space=sflag, size = 0x8, scoped, tag = 'scoped memory for tpu_custom_call.1']
    #allocation6 [shape = 'u8[32768]{0}', space=vmem, size = 0x8000, scoped, tag = 'output window, operand 0']
    %9 = vsyncpa [#allocation3], 0
    %s10 = scalar_lea.sflag [#allocation3], 1
    %11 = vsyncpa %s10, 0
    %12 = vsyncpa [#allocation5], 0
    %s13 = scalar_lea.sflag [#allocation5], 1
    %14 = vsyncpa %s13, 0
    loop: start=0, step=1, limit=6
    $region2: #{tpu_custom_call.1} parent=1 // loop_pre_header
      _
    $region3: #{tpu_custom_call.1} parent=1 // loop_header
      %s16 = sphi 0, %s20
      %p17 = scmp.ge.s32.totalorder %s16, 6
      %s23 = sphi 0, %s35
      %s24 = sphi 0, %s31
      %s25 = sphi 0, %s23
      %s26 = sphi 0, %s24
      %s27 = sphi 0, %s25
      %s28 = sphi 0, %s26
      %s40 = sphi 0, %s42
      %s43 = sphi 0, %s40
      %s44 = sphi 0, %s43
      %s60 = sphi 0, %s44
      %s64 = sphi 0, %s64
      %s66 = sphi 0, %s64
      %s67 = sphi 0, %s66
      %s81 = sphi 0, %s67
      %s85 = sphi 0, %s85
      %s87 = sphi 0, %s85
      %s88 = sphi 0, %s87
      %s102 = sphi 0, %s88
      %s108 = sphi 0, %s110
      %s111 = sphi 0, %s108
      %s112 = sphi 0, %s111
      %s128 = sphi 0, %s112
      %s136 = sphi 0, %s138
      %s139 = sphi 0, %s136
      %s140 = sphi 0, %s139
      %s156 = sphi 0, %s140
    $region4: #{tpu_custom_call.1} parent=1 // loop_header_branch
      %19 = sbr.rel (%p17) target = $region8
    $region5: #{tpu_custom_call.1} parent=1 // loop_body
      %s21 = ssub.s32 %s16, 1
      %s22 = ssub.s32 %s16, 2
      %s29 = sadd.s32 1, %s24
      %p30 = scmp.ge.s32.totalorder %s29, 2
      %s31 = scalar_select %p30, 0, %s29
      %s32 = sadd.s32 1, %s23
      %s33 = scalar_select %p30, %s32, %s23
      %p34 = scmp.ge.s32.totalorder %s33, 2
      %s35 = scalar_select %p34, 0, %s33
      %s36 = ssub.s32 %s23, %s35
      %s37 = ssub.s32 %s24, %s31
      %s38 = sor.u32 %s36, %s37
      %p39 = scmp.eq.s32.totalorder %s38, 0
      %s41 = sadd.s32 %s40, 1
      %s42 = scalar_select %p39, %s40, %s41
      %p45 = pneg %p39
      %p46 = scmp.eq.s32.totalorder %s16, 3
      %p47 = por %p45, %p46
      %p48 = scmp.ne.s32.totalorder %s40, %s43
      %p49 = scmp.eq.s32.totalorder %s16, 0
      %p50 = por %p48, %p49
      %p51 = scmp.ne.s32.totalorder %s40, %s43
      %p52 = scmp.eq.s32.totalorder %s21, 3
      %p53 = por %p51, %p52
      %p54 = scmp.ne.s32.totalorder %s43, %s44
      %p55 = scmp.eq.s32.totalorder %s21, 0
      %p56 = por %p54, %p55
      %p57 = scmp.ne.s32.totalorder %s43, %s44
      %p58 = scmp.eq.s32.totalorder %s22, 3
      %p59 = por %p57, %p58
      %p61 = scmp.ne.s32.totalorder %s44, %s60
      %p62 = scmp.eq.s32.totalorder %s22, 0
      %p63 = por %p61, %p62
      %s65 = sadd.s32 %s64, 1
      %p68 = scmp.eq.s32.totalorder %s16, 3
      %p69 = scmp.ne.s32.totalorder %s64, %s66
      %p70 = scmp.eq.s32.totalorder %s16, 0
      %p71 = por %p69, %p70
      %p72 = scmp.ne.s32.totalorder %s64, %s66
      %p73 = scmp.eq.s32.totalorder %s21, 3
      %p74 = por %p72, %p73
      %p75 = scmp.ne.s32.totalorder %s66, %s67
      %p76 = scmp.eq.s32.totalorder %s21, 0
      %p77 = por %p75, %p76
      %p78 = scmp.ne.s32.totalorder %s66, %s67
      %p79 = scmp.eq.s32.totalorder %s22, 3
      %p80 = por %p78, %p79
      %p82 = scmp.ne.s32.totalorder %s67, %s81
      %p83 = scmp.eq.s32.totalorder %s22, 0
      %p84 = por %p82, %p83
      %s86 = sadd.s32 %s85, 1
      %p89 = scmp.eq.s32.totalorder %s16, 3
      %p90 = scmp.ne.s32.totalorder %s85, %s87
      %p91 = scmp.eq.s32.totalorder %s16, 0
      %p92 = por %p90, %p91
      %p93 = scmp.ne.s32.totalorder %s85, %s87
      %p94 = scmp.eq.s32.totalorder %s21, 3
      %p95 = por %p93, %p94
      %p96 = scmp.ne.s32.totalorder %s87, %s88
      %p97 = scmp.eq.s32.totalorder %s21, 0
      %p98 = por %p96, %p97
      %p99 = scmp.ne.s32.totalorder %s87, %s88
      %p100 = scmp.eq.s32.totalorder %s22, 3
      %p101 = por %p99, %p100
      %p103 = scmp.ne.s32.totalorder %s88, %s102
      %p104 = scmp.eq.s32.totalorder %s22, 0
      %p105 = por %p103, %p104
      %s106 = ssub.s32 %s24, %s31
      %p107 = scmp.eq.s32.totalorder %s106, 0
      %s109 = sadd.s32 %s108, 1
      %s110 = scalar_select %p107, %s108, %s109
      %p113 = pneg %p107
      %p114 = scmp.eq.s32.totalorder %s16, 3
      %p115 = por %p113, %p114
      %p116 = scmp.ne.s32.totalorder %s108, %s111
      %p117 = scmp.eq.s32.totalorder %s16, 0
      %p118 = por %p116, %p117
      %p119 = scmp.ne.s32.totalorder %s108, %s111
      %p120 = scmp.eq.s32.totalorder %s21, 3
      %p121 = por %p119, %p120
      %p122 = scmp.ne.s32.totalorder %s111, %s112
      %p123 = scmp.eq.s32.totalorder %s21, 0
      %p124 = por %p122, %p123
      %p125 = scmp.ne.s32.totalorder %s111, %s112
      %p126 = scmp.eq.s32.totalorder %s22, 3
      %p127 = por %p125, %p126
      %p129 = scmp.ne.s32.totalorder %s112, %s128
      %p130 = scmp.eq.s32.totalorder %s22, 0
      %p131 = por %p129, %p130
      %s132 = ssub.s32 %s23, %s35
      %s133 = ssub.s32 %s24, %s31
      %s134 = sor.u32 %s132, %s133
      %p135 = scmp.eq.s32.totalorder %s134, 0
      %s137 = sadd.s32 %s136, 1
      %s138 = scalar_select %p135, %s136, %s137
      %p141 = pneg %p135
      %p142 = scmp.eq.s32.totalorder %s16, 3
      %p143 = por %p141, %p142
      %p144 = scmp.ne.s32.totalorder %s136, %s139
      %p145 = scmp.eq.s32.totalorder %s16, 0
      %p146 = por %p144, %p145
      %p147 = scmp.ne.s32.totalorder %s136, %s139
      %p148 = scmp.eq.s32.totalorder %s21, 3
      %p149 = por %p147, %p148
      %p150 = scmp.ne.s32.totalorder %s139, %s140
      %p151 = scmp.eq.s32.totalorder %s21, 0
      %p152 = por %p150, %p151
      %p153 = scmp.ne.s32.totalorder %s139, %s140
      %p154 = scmp.eq.s32.totalorder %s22, 3
      %p155 = por %p153, %p154
      %p157 = scmp.ne.s32.totalorder %s140, %s156
      %p158 = scmp.eq.s32.totalorder %s22, 0
      %p159 = por %p157, %p158
      %p160 = scmp.le.s32.totalorder 1, %s16
      %p161 = scmp.lt.s32.totalorder %s16, 5
      %p162 = pnand %p160, %p161
      %p163 = pneg %p162
      // Predicated region
      $region9: #{tpu_custom_call.1} parent=5 // pred_check
        _
      $region10: #{tpu_custom_call.1} parent=5 // pred_check_branch
        %165 = sbr.rel (%p162) target = $region12
      $region11: #{tpu_custom_call.1} parent=5 // pred_region
        %s166 = ssub.s32 %s16, 1
        // Predicated region
        $region13: #{tpu_custom_call.1} parent=11 // pred_check
          %p167 = pneg %p77
        $region14: #{tpu_custom_call.1} parent=11 // pred_check_branch
          %169 = sbr.rel (%p167) target = $region16
        $region15: #{tpu_custom_call.1} parent=11 // pred_region
          _
        $region16: #{tpu_custom_call.1} parent=11 // pred_fallthru
          _
        // Predicated region
        $region17: #{tpu_custom_call.1} parent=11 // pred_check
          %p170 = pneg %p98
        $region18: #{tpu_custom_call.1} parent=11 // pred_check_branch
          %172 = sbr.rel (%p170) target = $region20
        $region19: #{tpu_custom_call.1} parent=11 // pred_region
          _
        $region20: #{tpu_custom_call.1} parent=11 // pred_fallthru
          _
      $region12: #{tpu_custom_call.1} parent=5 // pred_fallthru
        _
      %p173 = scmp.lt.s32.totalorder %s16, 4
      // Predicated region
      $region21: #{tpu_custom_call.1} parent=5 // pred_check
        %p174 = pneg %p173
      $region22: #{tpu_custom_call.1} parent=5 // pred_check_branch
        %176 = sbr.rel (%p174) target = $region24
      $region23: #{tpu_custom_call.1} parent=5 // pred_region
        // Predicated region
        $region25: #{tpu_custom_call.1} parent=23 // pred_check
          %p177 = pneg %p50
        $region26: #{tpu_custom_call.1} parent=23 // pred_check_branch
          %179 = sbr.rel (%p177) target = $region28
        $region27: #{tpu_custom_call.1} parent=23 // pred_region
          %s180 = sand.u32 %s40, 1
          %s181 = scalar_lea.sflag [#allocation3], %s180
          %s182 = sand.u32 %s40, 1
          %s183 = smul.addr %s182, 32
          %s184 = scalar_lea.vmem [#allocation2], %s183
          %186 = vsyncadd %s181, 0
          %s187 = smul.addr %s23, 8
          %s188 = sadd.s32 %s24, %s187
          %s189 = smul.addr %s188, 8
          %s190 = scalar_lea.hbm %s0, %s189
          %s191 = sshll.u32 %s190, 4
          %s192 = int_to_ptr.hbm [resolvable:$true] %s191
          %s193 = sshll.u32 %s184, 4
          %s194 = int_to_ptr.vmem [resolvable:$true] %s193
          %199 = dma.hbm_to_vmem [thread:$0]  %s192, 512, %s194, %s181, 256, 128, 8
        $region28: #{tpu_custom_call.1} parent=23 // pred_fallthru
          _
        // Predicated region
        $region29: #{tpu_custom_call.1} parent=23 // pred_check
          %p200 = pneg %p118
        $region30: #{tpu_custom_call.1} parent=23 // pred_check_branch
          %202 = sbr.rel (%p200) target = $region32
        $region31: #{tpu_custom_call.1} parent=23 // pred_region
          %s203 = sand.u32 %s108, 1
          %s204 = scalar_lea.sflag [#allocation5], %s203
          %s205 = sand.u32 %s108, 1
          %s206 = smul.addr %s205, 2
          %s207 = scalar_lea.vmem [#allocation4], %s206
          %209 = vsyncadd %s204, 0
          %s210 = smul.addr %s24, 2
          %s211 = scalar_lea.hbm %s3, %s210
          %s213 = sshll.u32 %s211, 4
          %s214 = int_to_ptr.hbm [resolvable:$true] %s213
          %s215 = sshll.u32 %s207, 4
          %s216 = int_to_ptr.vmem [resolvable:$true] %s215
          %218 = dma.hbm_to_vmem [thread:$0]  %s214, 32, %s216, %s204
        $region32: #{tpu_custom_call.1} parent=23 // pred_fallthru
          _
      $region24: #{tpu_custom_call.1} parent=5 // pred_fallthru
        _
      %p219 = scmp.le.s32.totalorder 1, %s16
      %p220 = scmp.lt.s32.totalorder %s16, 5
      %p221 = pnand %p219, %p220
      %p222 = pneg %p221
      // Predicated region
      $region33: #{tpu_custom_call.1} parent=5 // pred_check
        _
      $region34: #{tpu_custom_call.1} parent=5 // pred_check_branch
        %224 = sbr.rel (%p221) target = $region36
      $region35: #{tpu_custom_call.1} parent=5 // pred_region
        %s225 = ssub.s32 %s16, 1
        %s226 = sand.u32 %s43, 1
        %s227 = scalar_lea.sflag [#allocation3], %s226
        %s228 = sand.u32 %s43, 1
        %s229 = smul.addr %s228, 32
        %s230 = scalar_lea.vmem [#allocation2], %s229
        // Predicated region
        $region37: #{tpu_custom_call.1} parent=35 // pred_check
          %p231 = pneg %p56
        $region38: #{tpu_custom_call.1} parent=35 // pred_check_branch
          %233 = sbr.rel (%p231) target = $region40
        $region39: #{tpu_custom_call.1} parent=35 // pred_region
          %235 = dma.done %s227, 512
        $region40: #{tpu_custom_call.1} parent=35 // pred_fallthru
          _
        %s236 = sand.u32 %s111, 1
        %s237 = scalar_lea.sflag [#allocation5], %s236
        %s238 = sand.u32 %s111, 1
        %s239 = smul.addr %s238, 2
        %s240 = scalar_lea.vmem [#allocation4], %s239
        // Predicated region
        $region41: #{tpu_custom_call.1} parent=35 // pred_check
          %p241 = pneg %p124
        $region42: #{tpu_custom_call.1} parent=35 // pred_check_branch
          %243 = sbr.rel (%p241) target = $region44
        $region43: #{tpu_custom_call.1} parent=35 // pred_region
          %245 = dma.done %s237, 32
        $region44: #{tpu_custom_call.1} parent=35 // pred_fallthru
          _
        %s246 = sand.u32 %s43, 1
        %s247 = scalar_lea.sflag [#allocation3], %s246
        %s248 = sand.u32 %s43, 1
        %s249 = smul.addr %s248, 32
        %s250 = scalar_lea.vmem [#allocation2], %s249
        %p251 = pneg %p56
        %p252 = pneg %p53
        %p253 = pneg %p77
        %p254 = pneg %p74
        %p255 = pneg %p98
        %p256 = pneg %p95
        %s257 = sand.u32 %s111, 1
        %s258 = scalar_lea.sflag [#allocation5], %s257
        %s259 = sand.u32 %s111, 1
        %s260 = smul.addr %s259, 2
        %s261 = scalar_lea.vmem [#allocation4], %s260
        %p262 = pneg %p124
        %p263 = pneg %p121
        %p264 = pneg %p152
        %p265 = pneg %p149
        %s266 = sand.u32 %s139, 1
        %s267 = sand.u32 %s139, 1
        %s268 = smul.addr %s267, 32
        %s269 = scalar_lea.vmem [#allocation6], %s268
        %v270 = vld [vmem:[%s230] sm:$0xff]
        %v271 = vld [vmem:[%s230 + $0x8] sm:$0xff]
        %v272 = vld [vmem:[%s230 + $0x10] sm:$0xff]
        %v273 = vld [vmem:[%s230 + $0x18] sm:$0xff]
        %v274 = vld [vmem:[%s1] sm:$0xff]
        %v275 = vld [vmem:[%s1 + $0x8] sm:$0xff]
        %v276 = vld [vmem:[%s1 + $0x10] sm:$0xff]
        %v277 = vld [vmem:[%s1 + $0x18] sm:$0xf]
        %v278 = vld [vmem:[%s2] sm:$0xff]
        %v279 = vld [vmem:[%s2 + $0x8] sm:$0xff]
        %v280 = vld [vmem:[%s2 + $0x10] sm:$0xff]
        %v281 = vld [vmem:[%s2 + $0x18] sm:$0xf]
        %283 = vset.pattern.permute.xlu0 0
        %284 = vperm.xlu0 %283, %v278
        %v285 = vpop.permute.xlu0 %284
        %288 = vset.pattern.permute.xlu0 0
        %289 = vperm.xlu0 %288, %v279
        %v290 = vpop.permute.xlu0 %289
        %293 = vset.pattern.permute.xlu0 0
        %294 = vperm.xlu0 %293, %v280
        %v295 = vpop.permute.xlu0 %294
        %298 = vset.pattern.permute.xlu0 0
        %299 = vperm.xlu0 %298, %v281
        %v300 = vpop.permute.xlu0 %299
        %vm302 = vcmask 261120
        %v304 = vsel %vm302, %v274, 0
        %v307 = vsel %vm302, %v275, 0
        %v310 = vsel %vm302, %v276, 0
        %v313 = vsel %vm302, %v277, 0
        %315 = vmatpush.msra.mxu0 0.0
        %316 = vmatpush.msra.mxu0 0.0
        %317 = vmatpush.msra.mxu0 0.0
        %318 = vmatpush.msra.mxu0 0.0
        %319 = vmatpush.msra.mxu0 0.0
        %320 = vmatpush.msra.mxu0 0.0
        %321 = vmatpush.msra.mxu0 0.0
        %322 = vmatpush.msra.mxu0 0.0
        %323 = vmatpush.msra.mxu0 0.0
        %324 = vmatpush.msra.mxu0 0.0
        %325 = vmatpush.msra.mxu0 0.0
        %326 = vmatpush.msra.mxu0 0.0
        %327 = vmatpush.msra.mxu0 %v273
        %328 = vmatpush.msra.mxu0 %v272
        %329 = vmatpush.msra.mxu0 %v271
        %330 = vmatpush.msra.mxu0 %v270
        %331 = vmatmul.f32.gmra.mxu0 %v304
        %v332 = vpop.f32.mrf.mxu0
        %v333 = vadd.f32 %v285, %v332
        %334 = vmatmul.f32.gmra.mxu0 %v307
        %v335 = vpop.f32.mrf.mxu0
        %v336 = vadd.f32 %v290, %v335
        %337 = vmatmul.f32.gmra.mxu0 %v310
        %v338 = vpop.f32.mrf.mxu0
        %v339 = vadd.f32 %v295, %v338
        %340 = vmatmul.f32.gmra.mxu0 %v313
        %v341 = vpop.f32.mrf.mxu0
        %v342 = vadd.f32 %v300, %v341
        %343 = vdwg.mxu0
        %344 = vst [vmem:[%s269] sm:$0xff] %v333
        %345 = vst [vmem:[%s269 + $0x8] sm:$0xff] %v336
        %346 = vst [vmem:[%s269 + $0x10] sm:$0xff] %v339
        %347 = vst [vmem:[%s269 + $0x18] sm:$0xf] %v342
        %v348 = vld [vmem:[%s240] sm:$0x3]
        %v349 = vld [vmem:[%s269 + $0x1] sm:$0x1]
        %v350 = vsub.f32 0.0, %v349
        %v351 = vmul.f32 %v350, 1.442695
        %v352 = vpow.pop %v351
        %v353 = vadd.f32 %v352, 1.0
        %v354 = vrcp.pop %v353
        %355 = vst [vmem:[%s269 + $0x1] sm:$0x1] %v354
        %v356 = vld [vmem:[%s269 + $0x2] sm:$0x3]
        %v357 = vadd.f32 %v356, %v348
        %358 = vst [vmem:[%s269 + $0x2] sm:$0x3] %v357
        %v359 = vld [vmem:[%s269 + $0x6] sm:$0x1]
        %v360 = vmax.f32 %v359, 0.0
        %v361 = vand.u32 2147483647, %v359
        %v362 = vsub.f32 0.0, %v361
        %v363 = vmul.f32 %v362, 1.442695
        %v364 = vpow.pop %v363
        %v365 = vadd.f32 %v364, 1.0
        %v366 = vlog2.pop %v365
        %v367 = vmul.f32 %v366, 0.6931472
        %v368 = vadd.f32 %v360, %v367
        %369 = vst [vmem:[%s269 + $0x6] sm:$0x1] %v368
        %v370 = vld [vmem:[%s269 + $0x8] sm:$0x1]
        %v371 = vsub.f32 0.0, %v370
        %v372 = vmul.f32 %v371, 1.442695
        %v373 = vpow.pop %v372
        %v374 = vadd.f32 %v373, 1.0
        %v375 = vrcp.pop %v374
        %376 = vst [vmem:[%s269 + $0x8] sm:$0x1] %v375
        %v377 = vld [vmem:[%s269 + $0x9] sm:$0x3]
        %v378 = vadd.f32 %v377, %v348
        %379 = vst [vmem:[%s269 + $0x9] sm:$0x3] %v378
        %v380 = vld [vmem:[%s269 + $0xd] sm:$0x1]
        %v381 = vmax.f32 %v380, 0.0
        %v382 = vand.u32 2147483647, %v380
        %v383 = vsub.f32 0.0, %v382
        %v384 = vmul.f32 %v383, 1.442695
        %v385 = vpow.pop %v384
        %v386 = vadd.f32 %v385, 1.0
        %v387 = vlog2.pop %v386
        %v388 = vmul.f32 %v387, 0.6931472
        %v389 = vadd.f32 %v381, %v388
        %390 = vst [vmem:[%s269 + $0xd] sm:$0x1] %v389
        %v391 = vld [vmem:[%s269 + $0xf] sm:$0x1]
        %v392 = vsub.f32 0.0, %v391
        %v393 = vmul.f32 %v392, 1.442695
        %v394 = vpow.pop %v393
        %v395 = vadd.f32 %v394, 1.0
        %v396 = vrcp.pop %v395
        %397 = vst [vmem:[%s269 + $0xf] sm:$0x1] %v396
        %v398 = vld [vmem:[%s269 + $0x10] sm:$0x3]
        %v399 = vadd.f32 %v398, %v348
        %400 = vst [vmem:[%s269 + $0x10] sm:$0x3] %v399
        %v401 = vld [vmem:[%s269 + $0x14] sm:$0x1]
        %v402 = vmax.f32 %v401, 0.0
        %v403 = vand.u32 2147483647, %v401
        %v404 = vsub.f32 0.0, %v403
        %v405 = vmul.f32 %v404, 1.442695
        %v406 = vpow.pop %v405
        %v407 = vadd.f32 %v406, 1.0
        %v408 = vlog2.pop %v407
        %v409 = vmul.f32 %v408, 0.6931472
        %v410 = vadd.f32 %v402, %v409
        %411 = vst [vmem:[%s269 + $0x14] sm:$0x1] %v410
        %v412 = vld [vmem:[%s269 + $0x16] sm:$0x1]
        %v413 = vsub.f32 0.0, %v412
        %v414 = vmul.f32 %v413, 1.442695
        %v415 = vpow.pop %v414
        %v416 = vadd.f32 %v415, 1.0
        %v417 = vrcp.pop %v416
        %418 = vst [vmem:[%s269 + $0x16] sm:$0x1] %v417
        %v419 = vld [vmem:[%s269 + $0x17] sm:$0x3]
        %v420 = vadd.f32 %v419, %v348
        %421 = vst [vmem:[%s269 + $0x17] sm:$0x3] %v420
        %v422 = vld [vmem:[%s269 + $0x1b] sm:$0x1]
        %v423 = vmax.f32 %v422, 0.0
        %v424 = vand.u32 2147483647, %v422
        %v425 = vsub.f32 0.0, %v424
        %v426 = vmul.f32 %v425, 1.442695
        %v427 = vpow.pop %v426
        %v428 = vadd.f32 %v427, 1.0
        %v429 = vlog2.pop %v428
        %v430 = vmul.f32 %v429, 0.6931472
        %v431 = vadd.f32 %v423, %v430
        %432 = vst [vmem:[%s269 + $0x1b] sm:$0x1] %v431
        %s433 = sand.u32 %s139, 1
        %s434 = sand.u32 %s139, 1
        %s435 = smul.addr %s434, 32
        %s436 = scalar_lea.vmem [#allocation6], %s435
        // Predicated region
        $region45: #{tpu_custom_call.1} parent=35 // pred_check
          %p437 = pneg %p149
        $region46: #{tpu_custom_call.1} parent=35 // pred_check_branch
          %439 = sbr.rel (%p437) target = $region48
        $region47: #{tpu_custom_call.1} parent=35 // pred_region
          %s440 = smul.addr %s25, 8
          %s441 = sadd.s32 %s26, %s440
          %s442 = smul.addr %s441, 8
          %s443 = scalar_lea.vmem %s4, %s442
          // Predicated region
          $region49: #{tpu_custom_call.1} parent=47 // pred_check
            _
          $region50: #{tpu_custom_call.1} parent=47 // pred_check_branch
            %445 = sbr.rel (0) target = $region52
          $region51: #{tpu_custom_call.1} parent=47 // pred_region
            // Predicated region
            $region53: #{tpu_custom_call.1} parent=51 // pred_check
              _
            $region54: #{tpu_custom_call.1} parent=51 // pred_check_branch
              %447 = sbr.rel (0) target = $region56
            $region55: #{tpu_custom_call.1} parent=51 // pred_region
              // Predicated region
              $region68: #{tpu_custom_call.1} parent=55 // pred_check
                _
              $region69: #{tpu_custom_call.1} parent=55 // pred_check_branch
                %469 = sbr.rel (0) target = $region71
              $region70: #{tpu_custom_call.1} parent=55 // pred_region
                loop: start=0, step=1, limit=1
                $region72: #{tpu_custom_call.1} parent=70 // loop_pre_header
                  _
                $region73: #{tpu_custom_call.1} parent=70 // loop_header
                  %s471 = sphi 0, %s475
                  %p472 = scmp.ge.s32.totalorder %s471, 1
                  %s476 = sphi %s436, %s436
                  %s477 = sphi %s443, %s443
                $region74: #{tpu_custom_call.1} parent=70 // loop_header_branch
                  %474 = sbr.rel (%p472) target = $region78
                $region75: #{tpu_custom_call.1} parent=70 // loop_body
                  %v478 = vld [vmem:[%s476] sm:$0xff]
                  %479 = vst [vmem:[%s477] sm:$0xff] %v478
                  %v480 = vld [vmem:[%s476 + $0x8] sm:$0xff]
                  %481 = vst [vmem:[%s477 + $0x10] sm:$0xff] %v480
                  %v482 = vld [vmem:[%s476 + $0x10] sm:$0xff]
                  %483 = vst [vmem:[%s477 + $0x20] sm:$0xff] %v482
                  %v484 = vld [vmem:[%s476 + $0x18] sm:$0xff]
                  %485 = vst [vmem:[%s477 + $0x30] sm:$0xff] %v484
                $region76: #{tpu_custom_call.1} parent=70 // loop_footer
                  %s475 = sadd.s32 1, %s471
                $region77: #{tpu_custom_call.1} parent=70 // loop_footer_branch
                  %470 = sbr.rel target = $region73
                $region78: #{tpu_custom_call.1} parent=70 // loop_exit
                  _
              $region71: #{tpu_custom_call.1} parent=55 // pred_fallthru
                _
              // Predicated region
              $region79: #{tpu_custom_call.1} parent=55 // pred_check
                _
              $region80: #{tpu_custom_call.1} parent=55 // pred_check_branch
                %487 = sbr.rel target = $region82
              $region81: #{tpu_custom_call.1} parent=55 // pred_region
                _
              $region82: #{tpu_custom_call.1} parent=55 // pred_fallthru
                _
            $region56: #{tpu_custom_call.1} parent=51 // pred_fallthru
              _
            // Predicated region
            $region57: #{tpu_custom_call.1} parent=51 // pred_check
              _
            $region58: #{tpu_custom_call.1} parent=51 // pred_check_branch
              %449 = sbr.rel target = $region60
            $region59: #{tpu_custom_call.1} parent=51 // pred_region
              %s451 = ssub.s32 256, 1
              loop: start=0, step=1, limit=1
              $region61: #{tpu_custom_call.1} parent=59 // loop_pre_header
                _
              $region62: #{tpu_custom_call.1} parent=59 // loop_header
                %s453 = sphi 0, %s457
                %p454 = scmp.ge.s32.totalorder %s453, 1
                %s458 = sphi %s436, %s436
                %s459 = sphi %s443, %s443
              $region63: #{tpu_custom_call.1} parent=59 // loop_header_branch
                %456 = sbr.rel (%p454) target = $region67
              $region64: #{tpu_custom_call.1} parent=59 // loop_body
                %v460 = vld [vmem:[%s458] sm:%s451]
                %461 = vst [vmem:[%s459] sm:%s451] %v460
                %v462 = vld [vmem:[%s458 + $0x8] sm:%s451]
                %463 = vst [vmem:[%s459 + $0x10] sm:%s451] %v462
                %v464 = vld [vmem:[%s458 + $0x10] sm:%s451]
                %465 = vst [vmem:[%s459 + $0x20] sm:%s451] %v464
                %v466 = vld [vmem:[%s458 + $0x18] sm:%s451]
                %467 = vst [vmem:[%s459 + $0x30] sm:%s451] %v466
              $region65: #{tpu_custom_call.1} parent=59 // loop_footer
                %s457 = sadd.s32 1, %s453
              $region66: #{tpu_custom_call.1} parent=59 // loop_footer_branch
                %452 = sbr.rel target = $region62
              $region67: #{tpu_custom_call.1} parent=59 // loop_exit
                _
            $region60: #{tpu_custom_call.1} parent=51 // pred_fallthru
              _
          $region52: #{tpu_custom_call.1} parent=47 // pred_fallthru
            _
          %488 = vnop
        $region48: #{tpu_custom_call.1} parent=35 // pred_fallthru
          _
      $region36: #{tpu_custom_call.1} parent=5 // pred_fallthru
        _
      %p489 = scmp.le.s32.totalorder 2, %s16
      // Predicated region
      $region83: #{tpu_custom_call.1} parent=5 // pred_check
        %p490 = pneg %p489
      $region84: #{tpu_custom_call.1} parent=5 // pred_check_branch
        %492 = sbr.rel (%p490) target = $region86
      $region85: #{tpu_custom_call.1} parent=5 // pred_region
        %s493 = ssub.s32 %s16, 2
        // Predicated region
        $region87: #{tpu_custom_call.1} parent=85 // pred_check
          %p494 = pneg %p155
        $region88: #{tpu_custom_call.1} parent=85 // pred_check_branch
          %496 = sbr.rel (%p494) target = $region90
        $region89: #{tpu_custom_call.1} parent=85 // pred_region
          %s497 = sand.u32 %s140, 1
          %s498 = sand.u32 %s140, 1
          %s499 = smul.addr %s498, 32
          %s500 = scalar_lea.vmem [#allocation6], %s499
        $region90: #{tpu_custom_call.1} parent=85 // pred_fallthru
          _
      $region86: #{tpu_custom_call.1} parent=5 // pred_fallthru
        _
    $region6: #{tpu_custom_call.1} parent=1 // loop_footer
      %s20 = sadd.s32 1, %s16
    $region7: #{tpu_custom_call.1} parent=1 // loop_footer_branch
      %15 = sbr.rel target = $region3
    $region8: #{tpu_custom_call.1} parent=1 // loop_exit
      _
    %501 = vsyncpa [#allocation3], 1
    %s502 = scalar_lea.sflag [#allocation3], 1
    %503 = vsyncpa %s502, 1
    %504 = vsyncpa [#allocation5], 1
    %s505 = scalar_lea.sflag [#allocation5], 1
    %506 = vsyncpa %s505, 1

</llo_original>
